<compile_context>
chip_gen: v7x
topology: tpu7x:2x2x1
jax: 0.10.0
libtpu: 0.0.40
codegen_flags: <defaults>
</compile_context>

<pallas_src>
import functools

import jax
import jax.numpy as jnp
import numpy as np
from jax.experimental import pallas as pl
from jax.experimental.pallas import tpu as pltpu


def _round_up(x, m):
    return (x + m - 1) // m * m


def _gru_decoder_kernel(
    # ---- inputs -------------------------------------------------------------
    x_ref,        # (t_chunk, Bp, I)   mm_dtype, pipelined per chunk
    h0_ref,       # (Bp, Hp)           f32, constant index
    bcomb_ref,    # (1, 3Hp)           f32, b_ih + [b_hr, b_hz, 0] folded
    bhn_ref,      # (1, Hp)            f32, n-gate recurrent bias
    bfc_ref,      # (1, Op)            f32, FC bias
    wih_hbm,      # (I, 3Hp)           mm_dtype, memory_space=pl.ANY
    whh_hbm,      # (Hp, 3Hp)          mm_dtype, memory_space=pl.ANY
    wfc_hbm,      # (Hp, Op)           mm_dtype, memory_space=pl.ANY
    # ---- outputs ------------------------------------------------------------
    out_ref,      # (t_chunk, Bp, Op)  f32  (FC fused in-kernel)
    hN_ref,       # (Bp, Hp)           f32  (resident; final hidden state)
    # ---- scratch ------------------------------------------------------------
    wih_vmem, whh_vmem, wfc_vmem,      # single-buffered resident weights
    w_sem,                             # DMA sems (3,)
    gi_scr,       # (t_chunk, Bp, 3Hp) f32  chunk input projection
    h_scr,        # (Bp, Hp)           f32  hidden state carried across chunks
    *, t_chunk, seq_len, unroll, guard_tail):
  c = pl.program_id(0)

  @pl.when(c == 0)
  def _init():
    # Single-buffer the grid-invariant weights: one DMA each, kept resident.
    copies = [pltpu.make_async_copy(wih_hbm, wih_vmem, w_sem.at[0]),
              pltpu.make_async_copy(whh_hbm, whh_vmem, w_sem.at[1]),
              pltpu.make_async_copy(wfc_hbm, wfc_vmem, w_sem.at[2])]
    for cp in copies:
      cp.start()
    for cp in copies:
      cp.wait()
    h_scr[...] = h0_ref[...].astype(jnp.float32)

  tc, Bp, I = x_ref.shape
  Hp = h_scr.shape[-1]

  # ---- chunk input projection: one large MXU matmul, independent of the
  # ---- recurrence; result parked in VMEM scratch (never touches HBM).
  x_flat = x_ref[...].reshape(tc * Bp, I)
  gi = jnp.dot(x_flat, wih_vmem[...], preferred_element_type=jnp.float32)
  gi = gi + bcomb_ref[...]
  gi_scr[...] = gi.reshape(tc, Bp, 3 * Hp)

  # Hoist constant loads out of the time loop.
  whh = whh_vmem[...]
  wfc = wfc_vmem[...]
  bhn = bhn_ref[...]
  bfc = bfc_ref[...]

  def step(tt, h_prev):
    gi_t = gi_scr[tt]                                              # (Bp, 3Hp) f32
    gh = jnp.dot(h_prev.astype(whh.dtype), whh,
                 preferred_element_type=jnp.float32)               # (Bp, 3Hp)
    # PyTorch GRU gate order: r, z, n.  (Hp is a multiple of 128, so these
    # lane slices land on clean tile boundaries.)
    r = jax.nn.sigmoid(gi_t[:, 0:Hp] + gh[:, 0:Hp])
    z = jax.nn.sigmoid(gi_t[:, Hp:2 * Hp] + gh[:, Hp:2 * Hp])
    n = jnp.tanh(gi_t[:, 2 * Hp:3 * Hp] + r * (gh[:, 2 * Hp:3 * Hp] + bhn))
    h_new = (1.0 - z) * n + z * h_prev
    if guard_tail:
      # Padded trailing timesteps must not advance the hidden state.
      h_new = jnp.where(c * t_chunk + tt < seq_len, h_new, h_prev)
    # Fused output Linear: off the recurrence critical path, fills MXU slack.
    out_ref[tt] = (jnp.dot(h_new.astype(wfc.dtype), wfc,
                           preferred_element_type=jnp.float32)
                   + bfc).astype(out_ref.dtype)
    return h_new

  h_last = jax.lax.fori_loop(0, t_chunk, step, h_scr[...], unroll=unroll)
  h_scr[...] = h_last
  hN_ref[...] = h_last


def gru_decoder_forward(x_input, encoder_hidden_states, params, *,
                        t_chunk=8, unroll=4, mm_dtype=jnp.bfloat16,
                        vmem_budget_bytes=40 << 20):
  """x_input: (B, T, I) batch-first; encoder_hidden_states: (1, B, H).
  Returns (output (B, T, O), hidden (1, B, H)) — same as the PyTorch module."""
  B, T, I = x_input.shape
  H = params["w_hh"].shape[0]
  O = params["w_fc"].shape[1]

  # Lane/sublane-friendly padding (zero-padding is exact for GRU + Linear).
  Bp = _round_up(max(B, 1), 8)
  Hp = _round_up(H, 128)
  Op = _round_up(O, 128)

  def pad_gates(w, lead_pad):          # (lead, 3H) -> (lead_pad, 3Hp), per gate
    lead = w.shape[0]
    w3 = w.reshape(lead, 3, H)
    w3 = jnp.pad(w3, ((0, lead_pad - lead), (0, 0), (0, Hp - H)))
    return w3.reshape(lead_pad, 3 * Hp)

  w_ih = pad_gates(params["w_ih"], I).astype(mm_dtype)             # (I, 3Hp)
  w_hh = pad_gates(params["w_hh"], Hp).astype(mm_dtype)            # (Hp, 3Hp)
  b_ih = pad_gates(params["b_ih"], 1)                              # (1, 3Hp) f32
  b_hh = pad_gates(params["b_hh"], 1)                              # (1, 3Hp) f32
  # Fold the r/z recurrent biases into the input-projection bias; only the
  # n-gate bias must stay inside the r*(.) term.
  b_comb = b_ih.at[:, :2 * Hp].add(b_hh[:, :2 * Hp])
  b_hn = b_hh[:, 2 * Hp:]
  w_fc = jnp.pad(params["w_fc"], ((0, Hp - H), (0, Op - O))).astype(mm_dtype)
  b_fc = jnp.pad(params["b_fc"], ((0, 0), (0, Op - O)))
  h0 = jnp.pad(encoder_hidden_states[0].astype(jnp.float32),
               ((0, Bp - B), (0, Hp - H)))

  # ---- chunking: auto-shrink t_chunk until the footprint fits the budget ----
  mm_bytes = jnp.dtype(mm_dtype).itemsize
  t_chunk = max(1, min(t_chunk, T))

  def vmem_need(tc):
    return (2 * tc * Bp * I * mm_bytes          # x chunk (double-buffered)
            + 2 * tc * Bp * Op * 4              # out chunk (double-buffered)
            + tc * Bp * 3 * Hp * 4              # gi scratch
            + (I + Hp) * 3 * Hp * mm_bytes      # W_ih + W_hh (single-buffered)
            + Hp * Op * mm_bytes                # W_fc (single-buffered)
            + 2 * Bp * Hp * 4                   # h0 + h scratch
            + 2 * Bp * Hp * 4                   # hN output
            + (4 * Hp + Op) * 4)                # biases

  while t_chunk > 1 and vmem_need(t_chunk) > vmem_budget_bytes:
    t_chunk //= 2
  num_chunks = pl.cdiv(T, t_chunk)
  T_pad = num_chunks * t_chunk
  guard_tail = (T_pad != T)
  unroll = max(1, min(unroll, t_chunk))
  # Explicit scoped-VMEM limit (default is only 16/32 MiB); cap v7x-safe.
  vmem_limit = min(max(int(vmem_need(t_chunk) * 1.5) + (2 << 20), 16 << 20),
                   64 << 20)

  # Time-major, padded, narrow (I-wide) input stream; gi never hits HBM.
  x_tm = jnp.transpose(x_input, (1, 0, 2)).astype(mm_dtype)
  x_tm = jnp.pad(x_tm, ((0, T_pad - T), (0, Bp - B), (0, 0)))

  kernel = functools.partial(_gru_decoder_kernel, t_chunk=t_chunk, seq_len=T,
                             unroll=unroll, guard_tail=guard_tail)

  out_pad, h_n = pl.pallas_call(
      kernel,
      out_shape=(jax.ShapeDtypeStruct((T_pad, Bp, Op), jnp.float32),
                 jax.ShapeDtypeStruct((Bp, Hp), jnp.float32)),
      grid_spec=pltpu.PrefetchScalarGridSpec(
          num_scalar_prefetch=0,
          grid=(num_chunks,),
          in_specs=[
              pl.BlockSpec((t_chunk, Bp, I), lambda c: (c, 0, 0)),   # x chunk
              pl.BlockSpec((Bp, Hp), lambda c: (0, 0)),              # h0
              pl.BlockSpec((1, 3 * Hp), lambda c: (0, 0)),           # b_comb
              pl.BlockSpec((1, Hp), lambda c: (0, 0)),               # b_hn
              pl.BlockSpec((1, Op), lambda c: (0, 0)),               # b_fc
              pl.BlockSpec(memory_space=pl.ANY),                     # W_ih (HBM)
              pl.BlockSpec(memory_space=pl.ANY),                     # W_hh (HBM)
              pl.BlockSpec(memory_space=pl.ANY),                     # W_fc (HBM)
          ],
          out_specs=[
              pl.BlockSpec((t_chunk, Bp, Op), lambda c: (c, 0, 0)),  # fused FC out
              pl.BlockSpec((Bp, Hp), lambda c: (0, 0)),              # final hidden
          ],
          scratch_shapes=[
              pltpu.VMEM((I, 3 * Hp), mm_dtype),        # W_ih resident
              pltpu.VMEM((Hp, 3 * Hp), mm_dtype),       # W_hh resident
              pltpu.VMEM((Hp, Op), mm_dtype),           # W_fc resident
              pltpu.SemaphoreType.DMA((3,)),
              pltpu.VMEM((t_chunk, Bp, 3 * Hp), jnp.float32),   # gi chunk
              pltpu.VMEM((Bp, Hp), jnp.float32),                # h carry
          ]),
      compiler_params=pltpu.CompilerParams(
          dimension_semantics=("arbitrary",),    # recurrence is strictly sequential
          vmem_limit_bytes=vmem_limit),
  )(x_tm, h0, b_comb, b_hn, b_fc, w_ih, w_hh, w_fc)

  output = jnp.transpose(out_pad[:T, :B, :O], (1, 0, 2))             # (B, T, O)
  hidden = h_n[:B, :H][None, :, :]                                   # (1, B, H)
  return output, hidden


def init_params(key, input_size, hidden_size, output_size):
  """PyTorch-style uniform(-1/sqrt(H), 1/sqrt(H)) init, deterministic."""
  k = 1.0 / np.sqrt(hidden_size)
  keys = jax.random.split(key, 6)
  u = lambda kk, shape: jax.random.uniform(kk, shape, jnp.float32, -k, k)
  return {
      # stored transposed: (in, 3H) / (H, 3H) / (H, O); gate order r, z, n
      "w_ih": u(keys[0], (input_size, 3 * hidden_size)),
      "w_hh": u(keys[1], (hidden_size, 3 * hidden_size)),
      "b_ih": u(keys[2], (1, 3 * hidden_size)),
      "b_hh": u(keys[3], (1, 3 * hidden_size)),
      "w_fc": u(keys[4], (hidden_size, output_size)),
      "b_fc": u(keys[5], (1, output_size)),
  }


def _reference_forward(x_input, encoder_hidden_states, params):
  """Pure-JAX f32 reference (lax.scan GRU), mirrors PyTorch nn.GRU + Linear."""
  H = params["w_hh"].shape[0]
  h0 = encoder_hidden_states[0].astype(jnp.float32)
  x_tm = jnp.transpose(x_input, (1, 0, 2)).astype(jnp.float32)

  def step(h, x_t):
    gi = x_t @ params["w_ih"] + params["b_ih"]
    gh = h @ params["w_hh"] + params["b_hh"]
    i_r, i_z, i_n = gi[:, :H], gi[:, H:2 * H], gi[:, 2 * H:]
    h_r, h_z, h_n = gh[:, :H], gh[:, H:2 * H], gh[:, 2 * H:]
    r = jax.nn.sigmoid(i_r + h_r)
    z = jax.nn.sigmoid(i_z + h_z)
    n = jnp.tanh(i_n + r * h_n)
    h_new = (1.0 - z) * n + z * h
    return h_new, h_new

  h_last, hs = jax.lax.scan(step, h0, x_tm)
  out = hs @ params["w_fc"] + params["b_fc"]            # (T, B, O)
  return jnp.transpose(out, (1, 0, 2)), h_last[None]


if __name__ == "__main__":
  B, T = 2, 8
  input_size, hidden_size, output_size = 4, 32, 8

  key = jax.random.PRNGKey(0)
  k_x, k_h, k_p = jax.random.split(key, 3)
  x_input = jax.random.normal(k_x, (B, T, input_size), jnp.float32)
  encoder_hidden_states = jax.random.normal(k_h, (1, B, hidden_size), jnp.float32)
  params = init_params(k_p, input_size, hidden_size, output_size)

  ref_out, ref_hid = _reference_forward(x_input, encoder_hidden_states, params)

  # 1) f32-matmul path, multi-chunk grid (t_chunk=4): checks recurrence carry,
  #    padding and bias-fold semantics. Tolerance allows for MXU vs XLA f32
  #    matmul pass differences.
  out32, hid32 = gru_decoder_forward(x_input, encoder_hidden_states, params,
                                     t_chunk=4, mm_dtype=jnp.float32)
  jax.block_until_ready((out32, hid32))
  np.testing.assert_allclose(np.asarray(out32), np.asarray(ref_out),
                             rtol=1e-2, atol=1e-2)
  np.testing.assert_allclose(np.asarray(hid32), np.asarray(ref_hid),
                             rtol=1e-2, atol=1e-2)

  # 2) bf16-MXU production path with a ragged tail chunk (t_chunk=3 -> T_pad=9):
  #    checks the tail guard; tolerance loosened for bf16 operand quantization.
  outbf, hidbf = gru_decoder_forward(x_input, encoder_hidden_states, params,
                                     t_chunk=3, mm_dtype=jnp.bfloat16)
  jax.block_until_ready((outbf, hidbf))
  np.testing.assert_allclose(np.asarray(outbf), np.asarray(ref_out),
                             rtol=5e-2, atol=5e-2)
  np.testing.assert_allclose(np.asarray(hidbf), np.asarray(ref_hid),
                             rtol=5e-2, atol=5e-2)

  print("KERNEL_OK")
</pallas_src>

<mosaic_0001>
module attributes {stable_mosaic.version = 11 : i64} {
  func.func @_gru_decoder_kernel(%arg0: i32, %arg1: memref<4x8x4xf32, #tpu.memory_space<vmem>>, %arg2: memref<8x128xf32, #tpu.memory_space<vmem>>, %arg3: memref<1x384xf32, #tpu.memory_space<vmem>>, %arg4: memref<1x128xf32, #tpu.memory_space<vmem>>, %arg5: memref<1x128xf32, #tpu.memory_space<vmem>>, %arg6: memref<4x384xf32, #tpu.memory_space<any>>, %arg7: memref<128x384xf32, #tpu.memory_space<any>>, %arg8: memref<128x128xf32, #tpu.memory_space<any>>, %arg9: memref<4x8x128xf32, #tpu.memory_space<vmem>>, %arg10: memref<8x128xf32, #tpu.memory_space<vmem>>, %arg11: memref<4x384xf32, #tpu.memory_space<vmem>>, %arg12: memref<128x384xf32, #tpu.memory_space<vmem>>, %arg13: memref<128x128xf32, #tpu.memory_space<vmem>>, %arg14: memref<3x!tpu.dma_semaphore, #tpu.memory_space<semaphore_mem>>, %arg15: memref<4x8x384xf32, #tpu.memory_space<vmem>>, %arg16: memref<8x128xf32, #tpu.memory_space<vmem>>) attributes {dimension_semantics = [#tpu.dimension_semantics<arbitrary>], iteration_bounds = array<i64: 2>, scalar_prefetch = 0 : i64, scratch_operands = 6 : i64, tpu.core_type = #tpu.core_type<tc>, window_params = [{transform_indices = @transform_0, window_bounds = array<i64: 4, 8, 4>}, {pipeline_mode = #tpu.pipeline_mode<synchronous>, transform_indices = @transform_1, window_bounds = array<i64: 8, 128>}, {pipeline_mode = #tpu.pipeline_mode<synchronous>, transform_indices = @transform_2, window_bounds = array<i64: 1, 384>}, {pipeline_mode = #tpu.pipeline_mode<synchronous>, transform_indices = @transform_3, window_bounds = array<i64: 1, 128>}, {pipeline_mode = #tpu.pipeline_mode<synchronous>, transform_indices = @transform_4, window_bounds = array<i64: 1, 128>}, {}, {}, {}, {transform_indices = @transform_8, window_bounds = array<i64: 4, 8, 128>}, {pipeline_mode = #tpu.pipeline_mode<synchronous>, transform_indices = @transform_9, window_bounds = array<i64: 8, 128>}]} {
    %c0_i32 = arith.constant 0 : i32
    %0 = arith.cmpi eq, %arg0, %c0_i32 : i32
    %1 = arith.extui %0 : i1 to i32
    %c0_i32_0 = arith.constant 0 : i32
    %2 = arith.cmpi ne, %1, %c0_i32_0 : i32
    scf.if %2 {
      %c0_i32_61 = arith.constant 0 : i32
      %175 = tpu.memref_slice %arg14[%c0_i32_61] : memref<3x!tpu.dma_semaphore, #tpu.memory_space<semaphore_mem>> -> memref<1x!tpu.dma_semaphore, #tpu.memory_space<semaphore_mem>>
      %176 = tpu.memref_squeeze %175 : memref<1x!tpu.dma_semaphore, #tpu.memory_space<semaphore_mem>> -> memref<!tpu.dma_semaphore, #tpu.memory_space<semaphore_mem>>
      tpu.enqueue_dma source(%arg6 : memref<4x384xf32, #tpu.memory_space<any>>) target(%arg11 : memref<4x384xf32, #tpu.memory_space<vmem>>) target_semaphore(%176 : memref<!tpu.dma_semaphore, #tpu.memory_space<semaphore_mem>>)
      %c1_i32_62 = arith.constant 1 : i32
      %177 = tpu.memref_slice %arg14[%c1_i32_62] : memref<3x!tpu.dma_semaphore, #tpu.memory_space<semaphore_mem>> -> memref<1x!tpu.dma_semaphore, #tpu.memory_space<semaphore_mem>>
      %178 = tpu.memref_squeeze %177 : memref<1x!tpu.dma_semaphore, #tpu.memory_space<semaphore_mem>> -> memref<!tpu.dma_semaphore, #tpu.memory_space<semaphore_mem>>
      tpu.enqueue_dma source(%arg7 : memref<128x384xf32, #tpu.memory_space<any>>) target(%arg12 : memref<128x384xf32, #tpu.memory_space<vmem>>) target_semaphore(%178 : memref<!tpu.dma_semaphore, #tpu.memory_space<semaphore_mem>>)
      %c2_i32_63 = arith.constant 2 : i32
      %179 = tpu.memref_slice %arg14[%c2_i32_63] : memref<3x!tpu.dma_semaphore, #tpu.memory_space<semaphore_mem>> -> memref<1x!tpu.dma_semaphore, #tpu.memory_space<semaphore_mem>>
      %180 = tpu.memref_squeeze %179 : memref<1x!tpu.dma_semaphore, #tpu.memory_space<semaphore_mem>> -> memref<!tpu.dma_semaphore, #tpu.memory_space<semaphore_mem>>
      tpu.enqueue_dma source(%arg8 : memref<128x128xf32, #tpu.memory_space<any>>) target(%arg13 : memref<128x128xf32, #tpu.memory_space<vmem>>) target_semaphore(%180 : memref<!tpu.dma_semaphore, #tpu.memory_space<semaphore_mem>>)
      %c0_i32_64 = arith.constant 0 : i32
      %181 = tpu.memref_slice %arg14[%c0_i32_64] : memref<3x!tpu.dma_semaphore, #tpu.memory_space<semaphore_mem>> -> memref<1x!tpu.dma_semaphore, #tpu.memory_space<semaphore_mem>>
      %182 = tpu.memref_squeeze %181 : memref<1x!tpu.dma_semaphore, #tpu.memory_space<semaphore_mem>> -> memref<!tpu.dma_semaphore, #tpu.memory_space<semaphore_mem>>
      tpu.wait_dma2 semaphore(%182 : memref<!tpu.dma_semaphore, #tpu.memory_space<semaphore_mem>>) src(%arg6 : memref<4x384xf32, #tpu.memory_space<any>>) dst(%arg11 : memref<4x384xf32, #tpu.memory_space<vmem>>)
      %c1_i32_65 = arith.constant 1 : i32
      %183 = tpu.memref_slice %arg14[%c1_i32_65] : memref<3x!tpu.dma_semaphore, #tpu.memory_space<semaphore_mem>> -> memref<1x!tpu.dma_semaphore, #tpu.memory_space<semaphore_mem>>
      %184 = tpu.memref_squeeze %183 : memref<1x!tpu.dma_semaphore, #tpu.memory_space<semaphore_mem>> -> memref<!tpu.dma_semaphore, #tpu.memory_space<semaphore_mem>>
      tpu.wait_dma2 semaphore(%184 : memref<!tpu.dma_semaphore, #tpu.memory_space<semaphore_mem>>) src(%arg7 : memref<128x384xf32, #tpu.memory_space<any>>) dst(%arg12 : memref<128x384xf32, #tpu.memory_space<vmem>>)
      %c2_i32_66 = arith.constant 2 : i32
      %185 = tpu.memref_slice %arg14[%c2_i32_66] : memref<3x!tpu.dma_semaphore, #tpu.memory_space<semaphore_mem>> -> memref<1x!tpu.dma_semaphore, #tpu.memory_space<semaphore_mem>>
      %186 = tpu.memref_squeeze %185 : memref<1x!tpu.dma_semaphore, #tpu.memory_space<semaphore_mem>> -> memref<!tpu.dma_semaphore, #tpu.memory_space<semaphore_mem>>
      tpu.wait_dma2 semaphore(%186 : memref<!tpu.dma_semaphore, #tpu.memory_space<semaphore_mem>>) src(%arg8 : memref<128x128xf32, #tpu.memory_space<any>>) dst(%arg13 : memref<128x128xf32, #tpu.memory_space<vmem>>)
      %c0_67 = arith.constant 0 : index
      %c0_68 = arith.constant 0 : index
      %187 = vector.load %arg2[%c0_67, %c0_68] : memref<8x128xf32, #tpu.memory_space<vmem>>, vector<8x128xf32>
      %c0_69 = arith.constant 0 : index
      %c0_70 = arith.constant 0 : index
      %188 = vector.load %arg16[%c0_69, %c0_70] : memref<8x128xf32, #tpu.memory_space<vmem>>, vector<8x128xf32>
      tpu.vector_store %arg16[%c0_69, %c0_70], %187 {strides = array<i32>} : memref<8x128xf32, #tpu.memory_space<vmem>>, vector<8x128xf32>,
    } else {
    }
    %c0 = arith.constant 0 : index
    %c0_1 = arith.constant 0 : index
    %c0_2 = arith.constant 0 : index
    %3 = vector.load %arg1[%c0, %c0_1, %c0_2] : memref<4x8x4xf32, #tpu.memory_space<vmem>>, vector<4x8x4xf32>
    %4 = vector.shape_cast %3 : vector<4x8x4xf32> to vector<32x4xf32>
    %c0_3 = arith.constant 0 : index
    %c0_4 = arith.constant 0 : index
    %5 = vector.load %arg11[%c0_3, %c0_4] : memref<4x384xf32, #tpu.memory_space<vmem>>, vector<4x384xf32>
    %cst = arith.constant dense<0.000000e+00> : vector<32x384xf32>
    %6 = tpu.matmul %4, %5, %cst {dimension_numbers = #tpu.dot_dimension_numbers<[1], [0], [0], [1], [0, 0, 1, 1], [], []>} : vector<32x4xf32>, vector<4x384xf32>, vector<32x384xf32> -> vector<32x384xf32>
    %c0_5 = arith.constant 0 : index
    %c0_6 = arith.constant 0 : index
    %7 = vector.load %arg3[%c0_5, %c0_6] : memref<1x384xf32, #tpu.memory_space<vmem>>, vector<1x384xf32>
    %8 = vector.broadcast %7 : vector<1x384xf32> to vector<32x384xf32>
    %9 = arith.addf %6, %8 : vector<32x384xf32>
    %10 = vector.shape_cast %9 : vector<32x384xf32> to vector<4x8x384xf32>
    %c0_7 = arith.constant 0 : index
    %c0_8 = arith.constant 0 : index
    %c0_9 = arith.constant 0 : index
    %11 = vector.load %arg15[%c0_7, %c0_8, %c0_9] : memref<4x8x384xf32, #tpu.memory_space<vmem>>, vector<4x8x384xf32>
    tpu.vector_store %arg15[%c0_7, %c0_8, %c0_9], %10 {strides = array<i32>} : memref<4x8x384xf32, #tpu.memory_space<vmem>>, vector<4x8x384xf32>,
    %c0_10 = arith.constant 0 : index
    %c0_11 = arith.constant 0 : index
    %12 = vector.load %arg12[%c0_10, %c0_11] : memref<128x384xf32, #tpu.memory_space<vmem>>, vector<128x384xf32>
    %c0_12 = arith.constant 0 : index
    %c0_13 = arith.constant 0 : index
    %13 = vector.load %arg13[%c0_12, %c0_13] : memref<128x128xf32, #tpu.memory_space<vmem>>, vector<128x128xf32>
    %c0_14 = arith.constant 0 : index
    %c0_15 = arith.constant 0 : index
    %14 = vector.load %arg4[%c0_14, %c0_15] : memref<1x128xf32, #tpu.memory_space<vmem>>, vector<1x128xf32>
    %c0_16 = arith.constant 0 : index
    %c0_17 = arith.constant 0 : index
    %15 = vector.load %arg5[%c0_16, %c0_17] : memref<1x128xf32, #tpu.memory_space<vmem>>, vector<1x128xf32>
    %c0_18 = arith.constant 0 : index
    %c0_19 = arith.constant 0 : index
    %16 = vector.load %arg16[%c0_18, %c0_19] : memref<8x128xf32, #tpu.memory_space<vmem>>, vector<8x128xf32>
    %c0_i32_20 = arith.constant 0 : i32
    %17 = arith.index_cast %c0_i32_20 : i32 to index
    %c0_21 = arith.constant 0 : index
    %c0_22 = arith.constant 0 : index
    %18 = vector.load %arg15[%17, %c0_21, %c0_22] : memref<4x8x384xf32, #tpu.memory_space<vmem>>, vector<1x8x384xf32>
    %19 = vector.shape_cast %18 : vector<1x8x384xf32> to vector<8x384xf32>
    %cst_23 = arith.constant dense<0.000000e+00> : vector<8x384xf32>
    %20 = tpu.matmul %16, %12, %cst_23 {dimension_numbers = #tpu.dot_dimension_numbers<[1], [0], [0], [1], [0, 0, 1, 1], [], []>} : vector<8x128xf32>, vector<128x384xf32>, vector<8x384xf32> -> vector<8x384xf32>
    %21 = vector.extract_strided_slice %19 {offsets = [0, 0], sizes = [8, 128], strides = [1, 1]} : vector<8x384xf32> to vector<8x128xf32>
    %22 = vector.extract_strided_slice %20 {offsets = [0, 0], sizes = [8, 128], strides = [1, 1]} : vector<8x384xf32> to vector<8x128xf32>
    %23 = arith.addf %21, %22 : vector<8x128xf32>
    %24 = arith.negf %23 : vector<8x128xf32>
    %25 = math.exp %24 : vector<8x128xf32>
    %cst_24 = arith.constant 1.000000e+00 : f32
    %26 = vector.broadcast %cst_24 : f32 to vector<8x128xf32>
    %27 = arith.addf %26, %25 : vector<8x128xf32>
    %28 = arith.divf %26, %27 : vector<8x128xf32>
    %29 = vector.extract_strided_slice %19 {offsets = [0, 128], sizes = [8, 128], strides = [1, 1]} : vector<8x384xf32> to vector<8x128xf32>
    %30 = vector.extract_strided_slice %20 {offsets = [0, 128], sizes = [8, 128], strides = [1, 1]} : vector<8x384xf32> to vector<8x128xf32>
    %31 = arith.addf %29, %30 : vector<8x128xf32>
    %32 = arith.negf %31 : vector<8x128xf32>
    %33 = math.exp %32 : vector<8x128xf32>
    %cst_25 = arith.constant 1.000000e+00 : f32
    %34 = vector.broadcast %cst_25 : f32 to vector<8x128xf32>
    %35 = arith.addf %34, %33 : vector<8x128xf32>
    %36 = arith.divf %34, %35 : vector<8x128xf32>
    %37 = vector.extract_strided_slice %19 {offsets = [0, 256], sizes = [8, 128], strides = [1, 1]} : vector<8x384xf32> to vector<8x128xf32>
    %38 = vector.extract_strided_slice %20 {offsets = [0, 256], sizes = [8, 128], strides = [1, 1]} : vector<8x384xf32> to vector<8x128xf32>
    %39 = vector.broadcast %14 : vector<1x128xf32> to vector<8x128xf32>
    %40 = arith.addf %38, %39 : vector<8x128xf32>
    %41 = arith.mulf %28, %40 : vector<8x128xf32>
    %42 = arith.addf %37, %41 : vector<8x128xf32>
    %43 = math.tanh %42 : vector<8x128xf32>
    %cst_26 = arith.constant 1.000000e+00 : f32
    %44 = vector.broadcast %cst_26 : f32 to vector<8x128xf32>
    %45 = arith.subf %44, %36 : vector<8x128xf32>
    %46 = arith.mulf %45, %43 : vector<8x128xf32>
    %47 = arith.mulf %36, %16 : vector<8x128xf32>
    %48 = arith.addf %46, %47 : vector<8x128xf32>
    %cst_27 = arith.constant dense<0.000000e+00> : vector<8x128xf32>
    %49 = tpu.matmul %48, %13, %cst_27 {dimension_numbers = #tpu.dot_dimension_numbers<[1], [0], [0], [1], [0, 0, 1, 1], [], []>} : vector<8x128xf32>, vector<128x128xf32>, vector<8x128xf32> -> vector<8x128xf32>
    %50 = vector.broadcast %15 : vector<1x128xf32> to vector<8x128xf32>
    %51 = arith.addf %49, %50 : vector<8x128xf32>
    %52 = arith.index_cast %c0_i32_20 : i32 to index
    %c0_28 = arith.constant 0 : index
    %c0_29 = arith.constant 0 : index
    %53 = vector.load %arg9[%52, %c0_28, %c0_29] : memref<4x8x128xf32, #tpu.memory_space<vmem>>, vector<1x8x128xf32>
    %54 = vector.shape_cast %53 : vector<1x8x128xf32> to vector<8x128xf32>
    %55 = vector.shape_cast %51 : vector<8x128xf32> to vector<1x8x128xf32>
    tpu.vector_store %arg9[%52, %c0_28, %c0_29], %55 {strides = array<i32>} : memref<4x8x128xf32, #tpu.memory_space<vmem>>, vector<1x8x128xf32>,
    %c1_i32 = arith.constant 1 : i32
    %56 = arith.index_cast %c1_i32 : i32 to index
    %c0_30 = arith.constant 0 : index
    %c0_31 = arith.constant 0 : index
    %57 = vector.load %arg15[%56, %c0_30, %c0_31] : memref<4x8x384xf32, #tpu.memory_space<vmem>>, vector<1x8x384xf32>
    %58 = vector.shape_cast %57 : vector<1x8x384xf32> to vector<8x384xf32>
    %cst_32 = arith.constant dense<0.000000e+00> : vector<8x384xf32>
    %59 = tpu.matmul %48, %12, %cst_32 {dimension_numbers = #tpu.dot_dimension_numbers<[1], [0], [0], [1], [0, 0, 1, 1], [], []>} : vector<8x128xf32>, vector<128x384xf32>, vector<8x384xf32> -> vector<8x384xf32>
    %60 = vector.extract_strided_slice %58 {offsets = [0, 0], sizes = [8, 128], strides = [1, 1]} : vector<8x384xf32> to vector<8x128xf32>
    %61 = vector.extract_strided_slice %59 {offsets = [0, 0], sizes = [8, 128], strides = [1, 1]} : vector<8x384xf32> to vector<8x128xf32>
    %62 = arith.addf %60, %61 : vector<8x128xf32>
    %63 = arith.negf %62 : vector<8x128xf32>
    %64 = math.exp %63 : vector<8x128xf32>
    %cst_33 = arith.constant 1.000000e+00 : f32
    %65 = vector.broadcast %cst_33 : f32 to vector<8x128xf32>
    %66 = arith.addf %65, %64 : vector<8x128xf32>
    %67 = arith.divf %65, %66 : vector<8x128xf32>
    %68 = vector.extract_strided_slice %58 {offsets = [0, 128], sizes = [8, 128], strides = [1, 1]} : vector<8x384xf32> to vector<8x128xf32>
    %69 = vector.extract_strided_slice %59 {offsets = [0, 128], sizes = [8, 128], strides = [1, 1]} : vector<8x384xf32> to vector<8x128xf32>
    %70 = arith.addf %68, %69 : vector<8x128xf32>
    %71 = arith.negf %70 : vector<8x128xf32>
    %72 = math.exp %71 : vector<8x128xf32>
    %cst_34 = arith.constant 1.000000e+00 : f32
    %73 = vector.broadcast %cst_34 : f32 to vector<8x128xf32>
    %74 = arith.addf %73, %72 : vector<8x128xf32>
    %75 = arith.divf %73, %74 : vector<8x128xf32>
    %76 = vector.extract_strided_slice %58 {offsets = [0, 256], sizes = [8, 128], strides = [1, 1]} : vector<8x384xf32> to vector<8x128xf32>
    %77 = vector.extract_strided_slice %59 {offsets = [0, 256], sizes = [8, 128], strides = [1, 1]} : vector<8x384xf32> to vector<8x128xf32>
    %78 = vector.broadcast %14 : vector<1x128xf32> to vector<8x128xf32>
    %79 = arith.addf %77, %78 : vector<8x128xf32>
    %80 = arith.mulf %67, %79 : vector<8x128xf32>
    %81 = arith.addf %76, %80 : vector<8x128xf32>
    %82 = math.tanh %81 : vector<8x128xf32>
    %cst_35 = arith.constant 1.000000e+00 : f32
    %83 = vector.broadcast %cst_35 : f32 to vector<8x128xf32>
    %84 = arith.subf %83, %75 : vector<8x128xf32>
    %85 = arith.mulf %84, %82 : vector<8x128xf32>
    %86 = arith.mulf %75, %48 : vector<8x128xf32>
    %87 = arith.addf %85, %86 : vector<8x128xf32>
    %cst_36 = arith.constant dense<0.000000e+00> : vector<8x128xf32>
    %88 = tpu.matmul %87, %13, %cst_36 {dimension_numbers = #tpu.dot_dimension_numbers<[1], [0], [0], [1], [0, 0, 1, 1], [], []>} : vector<8x128xf32>, vector<128x128xf32>, vector<8x128xf32> -> vector<8x128xf32>
    %89 = vector.broadcast %15 : vector<1x128xf32> to vector<8x128xf32>
    %90 = arith.addf %88, %89 : vector<8x128xf32>
    %91 = arith.index_cast %c1_i32 : i32 to index
    %c0_37 = arith.constant 0 : index
    %c0_38 = arith.constant 0 : index
    %92 = vector.load %arg9[%91, %c0_37, %c0_38] : memref<4x8x128xf32, #tpu.memory_space<vmem>>, vector<1x8x128xf32>
    %93 = vector.shape_cast %92 : vector<1x8x128xf32> to vector<8x128xf32>
    %94 = vector.shape_cast %90 : vector<8x128xf32> to vector<1x8x128xf32>
    tpu.vector_store %arg9[%91, %c0_37, %c0_38], %94 {strides = array<i32>} : memref<4x8x128xf32, #tpu.memory_space<vmem>>, vector<1x8x128xf32>,
    %c2_i32 = arith.constant 2 : i32
    %95 = arith.index_cast %c2_i32 : i32 to index
    %c0_39 = arith.constant 0 : index
    %c0_40 = arith.constant 0 : index
    %96 = vector.load %arg15[%95, %c0_39, %c0_40] : memref<4x8x384xf32, #tpu.memory_space<vmem>>, vector<1x8x384xf32>
    %97 = vector.shape_cast %96 : vector<1x8x384xf32> to vector<8x384xf32>
    %cst_41 = arith.constant dense<0.000000e+00> : vector<8x384xf32>
    %98 = tpu.matmul %87, %12, %cst_41 {dimension_numbers = #tpu.dot_dimension_numbers<[1], [0], [0], [1], [0, 0, 1, 1], [], []>} : vector<8x128xf32>, vector<128x384xf32>, vector<8x384xf32> -> vector<8x384xf32>
    %99 = vector.extract_strided_slice %97 {offsets = [0, 0], sizes = [8, 128], strides = [1, 1]} : vector<8x384xf32> to vector<8x128xf32>
    %100 = vector.extract_strided_slice %98 {offsets = [0, 0], sizes = [8, 128], strides = [1, 1]} : vector<8x384xf32> to vector<8x128xf32>
    %101 = arith.addf %99, %100 : vector<8x128xf32>
    %102 = arith.negf %101 : vector<8x128xf32>
    %103 = math.exp %102 : vector<8x128xf32>
    %cst_42 = arith.constant 1.000000e+00 : f32
    %104 = vector.broadcast %cst_42 : f32 to vector<8x128xf32>
    %105 = arith.addf %104, %103 : vector<8x128xf32>
    %106 = arith.divf %104, %105 : vector<8x128xf32>
    %107 = vector.extract_strided_slice %97 {offsets = [0, 128], sizes = [8, 128], strides = [1, 1]} : vector<8x384xf32> to vector<8x128xf32>
    %108 = vector.extract_strided_slice %98 {offsets = [0, 128], sizes = [8, 128], strides = [1, 1]} : vector<8x384xf32> to vector<8x128xf32>
    %109 = arith.addf %107, %108 : vector<8x128xf32>
    %110 = arith.negf %109 : vector<8x128xf32>
    %111 = math.exp %110 : vector<8x128xf32>
    %cst_43 = arith.constant 1.000000e+00 : f32
    %112 = vector.broadcast %cst_43 : f32 to vector<8x128xf32>
    %113 = arith.addf %112, %111 : vector<8x128xf32>
    %114 = arith.divf %112, %113 : vector<8x128xf32>
    %115 = vector.extract_strided_slice %97 {offsets = [0, 256], sizes = [8, 128], strides = [1, 1]} : vector<8x384xf32> to vector<8x128xf32>
    %116 = vector.extract_strided_slice %98 {offsets = [0, 256], sizes = [8, 128], strides = [1, 1]} : vector<8x384xf32> to vector<8x128xf32>
    %117 = vector.broadcast %14 : vector<1x128xf32> to vector<8x128xf32>
    %118 = arith.addf %116, %117 : vector<8x128xf32>
    %119 = arith.mulf %106, %118 : vector<8x128xf32>
    %120 = arith.addf %115, %119 : vector<8x128xf32>
    %121 = math.tanh %120 : vector<8x128xf32>
    %cst_44 = arith.constant 1.000000e+00 : f32
    %122 = vector.broadcast %cst_44 : f32 to vector<8x128xf32>
    %123 = arith.subf %122, %114 : vector<8x128xf32>
    %124 = arith.mulf %123, %121 : vector<8x128xf32>
    %125 = arith.mulf %114, %87 : vector<8x128xf32>
    %126 = arith.addf %124, %125 : vector<8x128xf32>
    %cst_45 = arith.constant dense<0.000000e+00> : vector<8x128xf32>
    %127 = tpu.matmul %126, %13, %cst_45 {dimension_numbers = #tpu.dot_dimension_numbers<[1], [0], [0], [1], [0, 0, 1, 1], [], []>} : vector<8x128xf32>, vector<128x128xf32>, vector<8x128xf32> -> vector<8x128xf32>
    %128 = vector.broadcast %15 : vector<1x128xf32> to vector<8x128xf32>
    %129 = arith.addf %127, %128 : vector<8x128xf32>
    %130 = arith.index_cast %c2_i32 : i32 to index
    %c0_46 = arith.constant 0 : index
    %c0_47 = arith.constant 0 : index
    %131 = vector.load %arg9[%130, %c0_46, %c0_47] : memref<4x8x128xf32, #tpu.memory_space<vmem>>, vector<1x8x128xf32>
    %132 = vector.shape_cast %131 : vector<1x8x128xf32> to vector<8x128xf32>
    %133 = vector.shape_cast %129 : vector<8x128xf32> to vector<1x8x128xf32>
    tpu.vector_store %arg9[%130, %c0_46, %c0_47], %133 {strides = array<i32>} : memref<4x8x128xf32, #tpu.memory_space<vmem>>, vector<1x8x128xf32>,
    %c3_i32 = arith.constant 3 : i32
    %134 = arith.index_cast %c3_i32 : i32 to index
    %c0_48 = arith.constant 0 : index
    %c0_49 = arith.constant 0 : index
    %135 = vector.load %arg15[%134, %c0_48, %c0_49] : memref<4x8x384xf32, #tpu.memory_space<vmem>>, vector<1x8x384xf32>
    %136 = vector.shape_cast %135 : vector<1x8x384xf32> to vector<8x384xf32>
    %cst_50 = arith.constant dense<0.000000e+00> : vector<8x384xf32>
    %137 = tpu.matmul %126, %12, %cst_50 {dimension_numbers = #tpu.dot_dimension_numbers<[1], [0], [0], [1], [0, 0, 1, 1], [], []>} : vector<8x128xf32>, vector<128x384xf32>, vector<8x384xf32> -> vector<8x384xf32>
    %138 = vector.extract_strided_slice %136 {offsets = [0, 0], sizes = [8, 128], strides = [1, 1]} : vector<8x384xf32> to vector<8x128xf32>
    %139 = vector.extract_strided_slice %137 {offsets = [0, 0], sizes = [8, 128], strides = [1, 1]} : vector<8x384xf32> to vector<8x128xf32>
    %140 = arith.addf %138, %139 : vector<8x128xf32>
    %141 = arith.negf %140 : vector<8x128xf32>
    %142 = math.exp %141 : vector<8x128xf32>
    %cst_51 = arith.constant 1.000000e+00 : f32
    %143 = vector.broadcast %cst_51 : f32 to vector<8x128xf32>
    %144 = arith.addf %143, %142 : vector<8x128xf32>
    %145 = arith.divf %143, %144 : vector<8x128xf32>
    %146 = vector.extract_strided_slice %136 {offsets = [0, 128], sizes = [8, 128], strides = [1, 1]} : vector<8x384xf32> to vector<8x128xf32>
    %147 = vector.extract_strided_slice %137 {offsets = [0, 128], sizes = [8, 128], strides = [1, 1]} : vector<8x384xf32> to vector<8x128xf32>
    %148 = arith.addf %146, %147 : vector<8x128xf32>
    %149 = arith.negf %148 : vector<8x128xf32>
    %150 = math.exp %149 : vector<8x128xf32>
    %cst_52 = arith.constant 1.000000e+00 : f32
    %151 = vector.broadcast %cst_52 : f32 to vector<8x128xf32>
    %152 = arith.addf %151, %150 : vector<8x128xf32>
    %153 = arith.divf %151, %152 : vector<8x128xf32>
    %154 = vector.extract_strided_slice %136 {offsets = [0, 256], sizes = [8, 128], strides = [1, 1]} : vector<8x384xf32> to vector<8x128xf32>
    %155 = vector.extract_strided_slice %137 {offsets = [0, 256], sizes = [8, 128], strides = [1, 1]} : vector<8x384xf32> to vector<8x128xf32>
    %156 = vector.broadcast %14 : vector<1x128xf32> to vector<8x128xf32>
    %157 = arith.addf %155, %156 : vector<8x128xf32>
    %158 = arith.mulf %145, %157 : vector<8x128xf32>
    %159 = arith.addf %154, %158 : vector<8x128xf32>
    %160 = math.tanh %159 : vector<8x128xf32>
    %cst_53 = arith.constant 1.000000e+00 : f32
    %161 = vector.broadcast %cst_53 : f32 to vector<8x128xf32>
    %162 = arith.subf %161, %153 : vector<8x128xf32>
    %163 = arith.mulf %162, %160 : vector<8x128xf32>
    %164 = arith.mulf %153, %126 : vector<8x128xf32>
    %165 = arith.addf %163, %164 : vector<8x128xf32>
    %cst_54 = arith.constant dense<0.000000e+00> : vector<8x128xf32>
    %166 = tpu.matmul %165, %13, %cst_54 {dimension_numbers = #tpu.dot_dimension_numbers<[1], [0], [0], [1], [0, 0, 1, 1], [], []>} : vector<8x128xf32>, vector<128x128xf32>, vector<8x128xf32> -> vector<8x128xf32>
    %167 = vector.broadcast %15 : vector<1x128xf32> to vector<8x128xf32>
    %168 = arith.addf %166, %167 : vector<8x128xf32>
    %169 = arith.index_cast %c3_i32 : i32 to index
    %c0_55 = arith.constant 0 : index
    %c0_56 = arith.constant 0 : index
    %170 = vector.load %arg9[%169, %c0_55, %c0_56] : memref<4x8x128xf32, #tpu.memory_space<vmem>>, vector<1x8x128xf32>
    %171 = vector.shape_cast %170 : vector<1x8x128xf32> to vector<8x128xf32>
    %172 = vector.shape_cast %168 : vector<8x128xf32> to vector<1x8x128xf32>
    tpu.vector_store %arg9[%169, %c0_55, %c0_56], %172 {strides = array<i32>} : memref<4x8x128xf32, #tpu.memory_space<vmem>>, vector<1x8x128xf32>,
    %c4_i32 = arith.constant 4 : i32
    %c0_57 = arith.constant 0 : index
    %c0_58 = arith.constant 0 : index
    %173 = vector.load %arg16[%c0_57, %c0_58] : memref<8x128xf32, #tpu.memory_space<vmem>>, vector<8x128xf32>
    tpu.vector_store %arg16[%c0_57, %c0_58], %165 {strides = array<i32>} : memref<8x128xf32, #tpu.memory_space<vmem>>, vector<8x128xf32>,
    %c0_59 = arith.constant 0 : index
    %c0_60 = arith.constant 0 : index
    %174 = vector.load %arg10[%c0_59, %c0_60] : memref<8x128xf32, #tpu.memory_space<vmem>>, vector<8x128xf32>
    tpu.vector_store %arg10[%c0_59, %c0_60], %165 {strides = array<i32>} : memref<8x128xf32, #tpu.memory_space<vmem>>, vector<8x128xf32>,
    return
  }
  func.func @transform_0(%arg0: i32) -> (i32, i32, i32) {
    %c0_i32 = arith.constant 0 : i32
    %c0_i32_0 = arith.constant 0 : i32
    %c0_i32_1 = arith.constant 0 : i32
    return %arg0, %c0_i32, %c0_i32_0 : i32, i32, i32
  }
  func.func @transform_1(%arg0: i32) -> (i32, i32) {
    %c0_i32 = arith.constant 0 : i32
    %c0_i32_0 = arith.constant 0 : i32
    %c0_i32_1 = arith.constant 0 : i32
    return %c0_i32, %c0_i32_0 : i32, i32
  }
  func.func @transform_2(%arg0: i32) -> (i32, i32) {
    %c0_i32 = arith.constant 0 : i32
    %c0_i32_0 = arith.constant 0 : i32
    %c0_i32_1 = arith.constant 0 : i32
    return %c0_i32, %c0_i32_0 : i32, i32
  }
  func.func @transform_3(%arg0: i32) -> (i32, i32) {
    %c0_i32 = arith.constant 0 : i32
    %c0_i32_0 = arith.constant 0 : i32
    %c0_i32_1 = arith.constant 0 : i32
    return %c0_i32, %c0_i32_0 : i32, i32
  }
  func.func @transform_4(%arg0: i32) -> (i32, i32) {
    %c0_i32 = arith.constant 0 : i32
    %c0_i32_0 = arith.constant 0 : i32
    %c0_i32_1 = arith.constant 0 : i32
    return %c0_i32, %c0_i32_0 : i32, i32
  }
  func.func @transform_8(%arg0: i32) -> (i32, i32, i32) {
    %c0_i32 = arith.constant 0 : i32
    %c0_i32_0 = arith.constant 0 : i32
    %c0_i32_1 = arith.constant 0 : i32
    return %arg0, %c0_i32, %c0_i32_0 : i32, i32, i32
  }
  func.func @transform_9(%arg0: i32) -> (i32, i32) {
    %c0_i32 = arith.constant 0 : i32
    %c0_i32_0 = arith.constant 0 : i32
    %c0_i32_1 = arith.constant 0 : i32
    return %c0_i32, %c0_i32_0 : i32, i32
  }
}

</mosaic_0001>

<llo_original>
// kernel: tpu_custom_call.1
$region0: #{tpu_custom_call.1}
  #allocation0 [shape = 'u32[]', space=smem, size = 0x4, offset = 0x4, fixed_abs, tag = 'smem constant byte address 0x4 - core index']
  #allocation1 [shape = 'u32[144,128]{1,0:T(1,128)}', space=vmem, size = 0x12000, scoped, tag = 'internal scratch']
  #allocation2 [shape = 'f32[4,384]{1,0:T(4,128)}', space=vmem, size = 0x1800, scoped, tag = 'scratch operand']
  #allocation3 [shape = 'f32[128,384]{1,0:T(8,128)}', space=vmem, size = 0x30000, scoped, tag = 'scratch operand']
  #allocation4 [shape = 'f32[128,128]{1,0:T(8,128)}', space=vmem, size = 0x10000, scoped, tag = 'scratch operand']
  #allocation5 [shape = 's32[3]{0}', space=sflag, size = 0xc, scoped, tag = 'scratch operand']
  #allocation6 [shape = 'f32[4,8,384]{2,1,0:T(8,128)}', space=vmem, size = 0xc000, scoped, tag = 'scratch operand']
  #allocation7 [shape = 'f32[8,128]{1,0:T(8,128)}', space=vmem, size = 0x1000, scoped, tag = 'scratch operand']
  #allocation12 [shape = 's32[]', space=sflag, size = 0x4, offset = 0, fixed_abs, tag = 'sflag constant byte address 0x0 - dummy sync flag']
  #allocation13 [shape = 's32[]', space=sflag, size = 0x4, offset = 0, fixed_abs, tag = 'sflag constant byte address 0x0 - dummy sync flag']
  #allocation14 [shape = 's32[]', space=sflag, size = 0x4, offset = 0, fixed_abs, tag = 'sflag constant byte address 0x0 - dummy sync flag']
  #allocation15 [shape = 'u32[]', space=smem, size = 0x4, offset = 0x44, fixed_abs, tag = 'smem constant byte address 0x44 - assertion arg 0']
  #allocation16 [shape = 'u32[]', space=smem, size = 0x4, offset = 0x48, fixed_abs, tag = 'smem constant byte address 0x48 - assertion arg 1']
  #allocation17 [shape = 's32[]', space=sflag, size = 0x4, offset = 0, fixed_abs, tag = 'sflag constant byte address 0x0 - dummy sync flag']
  #allocation18 [shape = 's32[]', space=sflag, size = 0x4, offset = 0, fixed_abs, tag = 'sflag constant byte address 0x0 - dummy sync flag']
  %s0 = inlined_call_operand.vmem [shape: f32[8,8,4], index: 0, kind: input, shape index: {}]
  %s1 = inlined_call_operand.vmem [shape: f32[8,128], index: 1, kind: input, shape index: {}]
  %s2 = inlined_call_operand.vmem [shape: f32[1,384], index: 2, kind: input, shape index: {}]
  %s3 = inlined_call_operand.vmem [shape: f32[1,128], index: 3, kind: input, shape index: {}]
  %s4 = inlined_call_operand.vmem [shape: f32[1,128], index: 4, kind: input, shape index: {}]
  %s5 = inlined_call_operand.vmem [shape: f32[4,384], index: 5, kind: input, shape index: {}]
  %s6 = inlined_call_operand.hbm [shape: f32[128,384], index: 6, kind: input, shape index: {}]
  %s7 = inlined_call_operand.hbm [shape: f32[128,128], index: 7, kind: input, shape index: {}]
  %s8 = inlined_call_operand.hbm [shape: f32[8,8,128], index: 8, kind: output, shape index: {0}]
  %s9 = inlined_call_operand.hbm [shape: f32[8,128], index: 9, kind: output, shape index: {1}]
  %10 = xla_tuple %s8, %s9
  %s11 = sld [smem:[#allocation0]]
  $region110: #{tpu_custom_call.1} parent=0
    _
  %s13 = ssub.s32 1, %s11
  %s14 = scalar_select 0, %s13, %s11
  $region1: #{tpu_custom_call.1} parent=0
    #allocation8 [shape = 'u8[32768]{0}', space=vmem, size = 0x8000, scoped, tag = 'output window, operand 0']
    #allocation9 [shape = 's32[2]{0}', space=sflag, size = 0x8, scoped, tag = 'scoped memory for tpu_custom_call.1']
    #allocation10 [shape = 'u8[4096]{0}', space=vmem, size = 0x1000, scoped, tag = 'output window, operand 1, single buffered']
    #allocation11 [shape = 's32[1]{0}', space=sflag, size = 0x4, scoped, tag = 'scoped memory for tpu_custom_call.1']
    %15 = vsyncpa [#allocation9], 0
    %s16 = scalar_lea.sflag [#allocation9], 1
    %17 = vsyncpa %s16, 0
    %18 = vsyncpa [#allocation11], 0
    loop: start=0, step=1, limit=4
    $region2: #{tpu_custom_call.1} parent=1 // loop_pre_header
      _
    $region3: #{tpu_custom_call.1} parent=1 // loop_header
      %s20 = sphi 0, %s24
      %p21 = scmp.ge.s32.totalorder %s20, 4
      %s30 = sphi 0, %s32
      %s33 = sphi 0, %s30
      %s34 = sphi 0, %s33
      %s50 = sphi 0, %s34
      %s54 = sphi 0, %s54
      %s56 = sphi 0, %s54
      %s57 = sphi 0, %s56
      %s71 = sphi 0, %s57
      %s75 = sphi 0, %s75
      %s77 = sphi 0, %s75
      %s78 = sphi 0, %s77
      %s92 = sphi 0, %s78
      %s96 = sphi 0, %s96
      %s98 = sphi 0, %s96
      %s99 = sphi 0, %s98
      %s113 = sphi 0, %s99
      %s117 = sphi 0, %s117
      %s119 = sphi 0, %s117
      %s120 = sphi 0, %s119
      %s134 = sphi 0, %s120
      %s140 = sphi 0, %s142
      %s143 = sphi 0, %s140
      %s144 = sphi 0, %s143
      %s160 = sphi 0, %s144
      %s164 = sphi 0, %s164
      %s166 = sphi 0, %s164
      %s167 = sphi 0, %s166
      %s181 = sphi 0, %s167
    $region4: #{tpu_custom_call.1} parent=1 // loop_header_branch
      %23 = sbr.rel (%p21) target = $region8
    $region5: #{tpu_custom_call.1} parent=1 // loop_body
      %s25 = ssub.s32 %s20, 1
      %s26 = ssub.s32 %s20, 2
      %s27 = sadd.s32 %s20, 1
      %s28 = ssub.s32 %s20, %s27
      %p29 = scmp.eq.s32.totalorder %s28, 0
      %s31 = sadd.s32 %s30, 1
      %s32 = scalar_select %p29, %s30, %s31
      %p35 = pneg %p29
      %p36 = scmp.eq.s32.totalorder %s20, 1
      %p37 = por %p35, %p36
      %p38 = scmp.ne.s32.totalorder %s30, %s33
      %p39 = scmp.eq.s32.totalorder %s20, 0
      %p40 = por %p38, %p39
      %p41 = scmp.ne.s32.totalorder %s30, %s33
      %p42 = scmp.eq.s32.totalorder %s25, 1
      %p43 = por %p41, %p42
      %p44 = scmp.ne.s32.totalorder %s33, %s34
      %p45 = scmp.eq.s32.totalorder %s25, 0
      %p46 = por %p44, %p45
      %p47 = scmp.ne.s32.totalorder %s33, %s34
      %p48 = scmp.eq.s32.totalorder %s26, 1
      %p49 = por %p47, %p48
      %p51 = scmp.ne.s32.totalorder %s34, %s50
      %p52 = scmp.eq.s32.totalorder %s26, 0
      %p53 = por %p51, %p52
      %s55 = sadd.s32 %s54, 1
      %p58 = scmp.eq.s32.totalorder %s20, 1
      %p59 = scmp.ne.s32.totalorder %s54, %s56
      %p60 = scmp.eq.s32.totalorder %s20, 0
      %p61 = por %p59, %p60
      %p62 = scmp.ne.s32.totalorder %s54, %s56
      %p63 = scmp.eq.s32.totalorder %s25, 1
      %p64 = por %p62, %p63
      %p65 = scmp.ne.s32.totalorder %s56, %s57
      %p66 = scmp.eq.s32.totalorder %s25, 0
      %p67 = por %p65, %p66
      %p68 = scmp.ne.s32.totalorder %s56, %s57
      %p69 = scmp.eq.s32.totalorder %s26, 1
      %p70 = por %p68, %p69
      %p72 = scmp.ne.s32.totalorder %s57, %s71
      %p73 = scmp.eq.s32.totalorder %s26, 0
      %p74 = por %p72, %p73
      %s76 = sadd.s32 %s75, 1
      %p79 = scmp.eq.s32.totalorder %s20, 1
      %p80 = scmp.ne.s32.totalorder %s75, %s77
      %p81 = scmp.eq.s32.totalorder %s20, 0
      %p82 = por %p80, %p81
      %p83 = scmp.ne.s32.totalorder %s75, %s77
      %p84 = scmp.eq.s32.totalorder %s25, 1
      %p85 = por %p83, %p84
      %p86 = scmp.ne.s32.totalorder %s77, %s78
      %p87 = scmp.eq.s32.totalorder %s25, 0
      %p88 = por %p86, %p87
      %p89 = scmp.ne.s32.totalorder %s77, %s78
      %p90 = scmp.eq.s32.totalorder %s26, 1
      %p91 = por %p89, %p90
      %p93 = scmp.ne.s32.totalorder %s78, %s92
      %p94 = scmp.eq.s32.totalorder %s26, 0
      %p95 = por %p93, %p94
      %s97 = sadd.s32 %s96, 1
      %p100 = scmp.eq.s32.totalorder %s20, 1
      %p101 = scmp.ne.s32.totalorder %s96, %s98
      %p102 = scmp.eq.s32.totalorder %s20, 0
      %p103 = por %p101, %p102
      %p104 = scmp.ne.s32.totalorder %s96, %s98
      %p105 = scmp.eq.s32.totalorder %s25, 1
      %p106 = por %p104, %p105
      %p107 = scmp.ne.s32.totalorder %s98, %s99
      %p108 = scmp.eq.s32.totalorder %s25, 0
      %p109 = por %p107, %p108
      %p110 = scmp.ne.s32.totalorder %s98, %s99
      %p111 = scmp.eq.s32.totalorder %s26, 1
      %p112 = por %p110, %p111
      %p114 = scmp.ne.s32.totalorder %s99, %s113
      %p115 = scmp.eq.s32.totalorder %s26, 0
      %p116 = por %p114, %p115
      %s118 = sadd.s32 %s117, 1
      %p121 = scmp.eq.s32.totalorder %s20, 1
      %p122 = scmp.ne.s32.totalorder %s117, %s119
      %p123 = scmp.eq.s32.totalorder %s20, 0
      %p124 = por %p122, %p123
      %p125 = scmp.ne.s32.totalorder %s117, %s119
      %p126 = scmp.eq.s32.totalorder %s25, 1
      %p127 = por %p125, %p126
      %p128 = scmp.ne.s32.totalorder %s119, %s120
      %p129 = scmp.eq.s32.totalorder %s25, 0
      %p130 = por %p128, %p129
      %p131 = scmp.ne.s32.totalorder %s119, %s120
      %p132 = scmp.eq.s32.totalorder %s26, 1
      %p133 = por %p131, %p132
      %p135 = scmp.ne.s32.totalorder %s120, %s134
      %p136 = scmp.eq.s32.totalorder %s26, 0
      %p137 = por %p135, %p136
      %s138 = ssub.s32 %s20, %s27
      %p139 = scmp.eq.s32.totalorder %s138, 0
      %s141 = sadd.s32 %s140, 1
      %s142 = scalar_select %p139, %s140, %s141
      %p145 = pneg %p139
      %p146 = scmp.eq.s32.totalorder %s20, 1
      %p147 = por %p145, %p146
      %p148 = scmp.ne.s32.totalorder %s140, %s143
      %p149 = scmp.eq.s32.totalorder %s20, 0
      %p150 = por %p148, %p149
      %p151 = scmp.ne.s32.totalorder %s140, %s143
      %p152 = scmp.eq.s32.totalorder %s25, 1
      %p153 = por %p151, %p152
      %p154 = scmp.ne.s32.totalorder %s143, %s144
      %p155 = scmp.eq.s32.totalorder %s25, 0
      %p156 = por %p154, %p155
      %p157 = scmp.ne.s32.totalorder %s143, %s144
      %p158 = scmp.eq.s32.totalorder %s26, 1
      %p159 = por %p157, %p158
      %p161 = scmp.ne.s32.totalorder %s144, %s160
      %p162 = scmp.eq.s32.totalorder %s26, 0
      %p163 = por %p161, %p162
      %s165 = sadd.s32 %s164, 1
      %p168 = scmp.eq.s32.totalorder %s20, 1
      %p169 = scmp.ne.s32.totalorder %s164, %s166
      %p170 = scmp.eq.s32.totalorder %s20, 0
      %p171 = por %p169, %p170
      %p172 = scmp.ne.s32.totalorder %s164, %s166
      %p173 = scmp.eq.s32.totalorder %s25, 1
      %p174 = por %p172, %p173
      %p175 = scmp.ne.s32.totalorder %s166, %s167
      %p176 = scmp.eq.s32.totalorder %s25, 0
      %p177 = por %p175, %p176
      %p178 = scmp.ne.s32.totalorder %s166, %s167
      %p179 = scmp.eq.s32.totalorder %s26, 1
      %p180 = por %p178, %p179
      %p182 = scmp.ne.s32.totalorder %s167, %s181
      %p183 = scmp.eq.s32.totalorder %s26, 0
      %p184 = por %p182, %p183
      %p185 = scmp.le.s32.totalorder 1, %s20
      %p186 = scmp.lt.s32.totalorder %s20, 3
      %p187 = pnand %p185, %p186
      %p188 = pneg %p187
      // Predicated region
      $region9: #{tpu_custom_call.1} parent=5 // pred_check
        _
      $region10: #{tpu_custom_call.1} parent=5 // pred_check_branch
        %190 = sbr.rel (%p187) target = $region12
      $region11: #{tpu_custom_call.1} parent=5 // pred_region
        %s191 = ssub.s32 %s20, 1
        // Predicated region
        $region13: #{tpu_custom_call.1} parent=11 // pred_check
          %p192 = pneg %p67
        $region14: #{tpu_custom_call.1} parent=11 // pred_check_branch
          %194 = sbr.rel (%p192) target = $region16
        $region15: #{tpu_custom_call.1} parent=11 // pred_region
          _
        $region16: #{tpu_custom_call.1} parent=11 // pred_fallthru
          _
        // Predicated region
        $region17: #{tpu_custom_call.1} parent=11 // pred_check
          %p195 = pneg %p88
        $region18: #{tpu_custom_call.1} parent=11 // pred_check_branch
          %197 = sbr.rel (%p195) target = $region20
        $region19: #{tpu_custom_call.1} parent=11 // pred_region
          _
        $region20: #{tpu_custom_call.1} parent=11 // pred_fallthru
          _
        // Predicated region
        $region21: #{tpu_custom_call.1} parent=11 // pred_check
          %p198 = pneg %p109
        $region22: #{tpu_custom_call.1} parent=11 // pred_check_branch
          %200 = sbr.rel (%p198) target = $region24
        $region23: #{tpu_custom_call.1} parent=11 // pred_region
          _
        $region24: #{tpu_custom_call.1} parent=11 // pred_fallthru
          _
        // Predicated region
        $region25: #{tpu_custom_call.1} parent=11 // pred_check
          %p201 = pneg %p130
        $region26: #{tpu_custom_call.1} parent=11 // pred_check_branch
          %203 = sbr.rel (%p201) target = $region28
        $region27: #{tpu_custom_call.1} parent=11 // pred_region
          _
        $region28: #{tpu_custom_call.1} parent=11 // pred_fallthru
          _
      $region12: #{tpu_custom_call.1} parent=5 // pred_fallthru
        _
      %p204 = scmp.lt.s32.totalorder %s20, 2
      // Predicated region
      $region29: #{tpu_custom_call.1} parent=5 // pred_check
        %p205 = pneg %p204
      $region30: #{tpu_custom_call.1} parent=5 // pred_check_branch
        %207 = sbr.rel (%p205) target = $region32
      $region31: #{tpu_custom_call.1} parent=5 // pred_region
        // Predicated region
        $region33: #{tpu_custom_call.1} parent=31 // pred_check
          %p208 = pneg %p40
        $region34: #{tpu_custom_call.1} parent=31 // pred_check_branch
          %210 = sbr.rel (%p208) target = $region36
        $region35: #{tpu_custom_call.1} parent=31 // pred_region
          %s211 = smul.u32 4, %s20
          %p212 = scmp.lt.s32.totalorder %s211, 7
          %s213 = scalar_select %p212, %s211, 7
          %s214 = smul.addr %s213, 8
          %s215 = scalar_lea.vmem %s0, %s214
          %s216 = smul.u32 4, %s20
        $region36: #{tpu_custom_call.1} parent=31 // pred_fallthru
          _
      $region32: #{tpu_custom_call.1} parent=5 // pred_fallthru
        _
      %p217 = scmp.le.s32.totalorder 1, %s20
      %p218 = scmp.lt.s32.totalorder %s20, 3
      %p219 = pnand %p217, %p218
      %p220 = pneg %p219
      // Predicated region
      $region37: #{tpu_custom_call.1} parent=5 // pred_check
        _
      $region38: #{tpu_custom_call.1} parent=5 // pred_check_branch
        %222 = sbr.rel (%p219) target = $region40
      $region39: #{tpu_custom_call.1} parent=5 // pred_region
        %s223 = ssub.s32 %s20, 1
        %s224 = smul.u32 4, %s25
        %p225 = scmp.lt.s32.totalorder %s224, 7
        %s226 = scalar_select %p225, %s224, 7
        %s227 = smul.addr %s226, 8
        %s228 = scalar_lea.vmem %s0, %s227
        %p229 = pneg %p46
        %p230 = pneg %p43
        %p231 = pneg %p67
        %p232 = pneg %p64
        %p233 = pneg %p88
        %p234 = pneg %p85
        %p235 = pneg %p109
        %p236 = pneg %p106
        %p237 = pneg %p130
        %p238 = pneg %p127
        %p239 = pneg %p156
        %p240 = pneg %p153
        %s241 = sand.u32 %s143, 1
        %s242 = scalar_lea.sflag [#allocation9], %s241
        %s243 = sand.u32 %s143, 1
        %s244 = smul.addr %s243, 32
        %s245 = scalar_lea.vmem [#allocation8], %s244
        %p246 = pneg %p177
        %p247 = pneg %p174
        %s248 = smul.u32 4, %s25
        %p249 = scmp.lt.s32.totalorder %s248, 7
        %s250 = scalar_select %p249, %s248, 7
        %s251 = smul.addr %s250, 8
        %s252 = scalar_lea.vmem %s0, %s251
        %s253 = smul.u32 4, %s25
        %s254 = smul.u32 4, %s25
        %p255 = scmp.eq.s32.totalorder %s25, 0
        // Predicated region
        $region41: #{tpu_custom_call.1} parent=39 // pred_check
          %p256 = pneg %p255
        $region42: #{tpu_custom_call.1} parent=39 // pred_check_branch
          %258 = sbr.rel (%p256) target = $region44
        $region43: #{tpu_custom_call.1} parent=39 // pred_region
          %p260 = scmp.lt.u32.totalorder 12, 8
          %p261 = pneg %p260
          // Predicated region
          $region45: #{tpu_custom_call.1} parent=43 // pred_check
            _
          $region46: #{tpu_custom_call.1} parent=43 // pred_check_branch
            %263 = sbr.rel (%p260) target = $region48
          $region47: #{tpu_custom_call.1} parent=43 // pred_region
            %s278 = sand.u32 12, 7
            %p279 = scmp.eq.s32.totalorder %s278, 0
            %p280 = pneg %p279
            // Predicated region
            $region60: #{tpu_custom_call.1} parent=47 // pred_check
              _
            $region61: #{tpu_custom_call.1} parent=47 // pred_check_branch
              %282 = sbr.rel (%p279) target = $region63
            $region62: #{tpu_custom_call.1} parent=47 // pred_region
              %s283 = sand.u32 12, 7
              %s284 = ssub.s32 12, %s283
              %s285 = scalar_lea.vmem %s5, %s284
              %s286 = ssub.s32 12, %s283
              %s287 = scalar_lea.vmem [#allocation2], %s286
              loop: start=0, step=1, limit=1
              $region64: #{tpu_custom_call.1} parent=62 // loop_pre_header
                _
              $region65: #{tpu_custom_call.1} parent=62 // loop_header
                %s289 = sphi 0, %s293
                %p290 = scmp.ge.s32.totalorder %s289, 1
                %s294 = sphi %s5, %s5
                %s295 = sphi [#allocation2], [#allocation2]
              $region66: #{tpu_custom_call.1} parent=62 // loop_header_branch
                %292 = sbr.rel (%p290) target = $region70
              $region67: #{tpu_custom_call.1} parent=62 // loop_body
                %v296 = vld [vmem:[%s294] sm:$0xff]
                %297 = vst [vmem:[%s295] sm:$0xff] %v296
              $region68: #{tpu_custom_call.1} parent=62 // loop_footer
                %s293 = sadd.s32 1, %s289
              $region69: #{tpu_custom_call.1} parent=62 // loop_footer_branch
                %288 = sbr.rel target = $region65
              $region70: #{tpu_custom_call.1} parent=62 // loop_exit
                _
              %s298 = sshllo.u32 0, %s283
              loop: start=0, step=1, limit=1
              $region71: #{tpu_custom_call.1} parent=62 // loop_pre_header
                _
              $region72: #{tpu_custom_call.1} parent=62 // loop_header
                %s300 = sphi 0, %s304
                %p301 = scmp.ge.s32.totalorder %s300, 1
                %s305 = sphi %s285, %s285
                %s306 = sphi %s287, %s287
              $region73: #{tpu_custom_call.1} parent=62 // loop_header_branch
                %303 = sbr.rel (%p301) target = $region77
              $region74: #{tpu_custom_call.1} parent=62 // loop_body
                %v307 = vld [vmem:[%s305] sm:%s298]
                %308 = vst [vmem:[%s306] sm:%s298] %v307
              $region75: #{tpu_custom_call.1} parent=62 // loop_footer
                %s304 = sadd.s32 1, %s300
              $region76: #{tpu_custom_call.1} parent=62 // loop_footer_branch
                %299 = sbr.rel target = $region72
              $region77: #{tpu_custom_call.1} parent=62 // loop_exit
                _
            $region63: #{tpu_custom_call.1} parent=47 // pred_fallthru
              _
          $region48: #{tpu_custom_call.1} parent=43 // pred_fallthru
            _
          // Predicated region
          $region49: #{tpu_custom_call.1} parent=43 // pred_check
            %p264 = pneg %p260
          $region50: #{tpu_custom_call.1} parent=43 // pred_check_branch
            %266 = sbr.rel (%p264) target = $region52
          $region51: #{tpu_custom_call.1} parent=43 // pred_region
            %s267 = sshllo.u32 0, 12
            loop: start=0, step=1, limit=1
            $region53: #{tpu_custom_call.1} parent=51 // loop_pre_header
              _
            $region54: #{tpu_custom_call.1} parent=51 // loop_header
              %s269 = sphi 0, %s273
              %p270 = scmp.ge.s32.totalorder %s269, 1
              %s274 = sphi %s5, %s5
              %s275 = sphi [#allocation2], [#allocation2]
            $region55: #{tpu_custom_call.1} parent=51 // loop_header_branch
              %272 = sbr.rel (%p270) target = $region59
            $region56: #{tpu_custom_call.1} parent=51 // loop_body
              %v276 = vld [vmem:[%s274] sm:%s267]
              %277 = vst [vmem:[%s275] sm:%s267] %v276
            $region57: #{tpu_custom_call.1} parent=51 // loop_footer
              %s273 = sadd.s32 1, %s269
            $region58: #{tpu_custom_call.1} parent=51 // loop_footer_branch
              %268 = sbr.rel target = $region54
            $region59: #{tpu_custom_call.1} parent=51 // loop_exit
              _
          $region52: #{tpu_custom_call.1} parent=43 // pred_fallthru
            _
          // Predicated region
          $region78: #{tpu_custom_call.1} parent=43 // pred_check
            _
          $region79: #{tpu_custom_call.1} parent=43 // pred_check_branch
            %311 = sbr.rel (0) target = $region81
          $region80: #{tpu_custom_call.1} parent=43 // pred_region
            %312 = vsyncadd [#allocation5], 192
          $region81: #{tpu_custom_call.1} parent=43 // pred_fallthru
            _
          %s313 = scalar_lea.sflag [#allocation5], 1
          // Predicated region
          $region82: #{tpu_custom_call.1} parent=43 // pred_check
            _
          $region83: #{tpu_custom_call.1} parent=43 // pred_check_branch
            %315 = sbr.rel target = $region85
          $region84: #{tpu_custom_call.1} parent=43 // pred_region
            %316 = sst [smem:[#allocation15]] [#allocation14]
            %317 = sst [smem:[#allocation16]] [#allocation13]
          $region85: #{tpu_custom_call.1} parent=43 // pred_fallthru
            _
          %319 = shalt.err (0)
          %s321 = sshll.u32 [#allocation3], 4
          %s322 = int_to_ptr.vmem [resolvable:$true] %s321
          %324 = dma.hbm_to_vmem [thread:$0]  %s6, 6144, %s322, %s313
          %s325 = scalar_lea.sflag [#allocation5], 2
          // Predicated region
          $region86: #{tpu_custom_call.1} parent=43 // pred_check
            _
          $region87: #{tpu_custom_call.1} parent=43 // pred_check_branch
            %327 = sbr.rel target = $region89
          $region88: #{tpu_custom_call.1} parent=43 // pred_region
            %328 = sst [smem:[#allocation15]] [#allocation18]
            %329 = sst [smem:[#allocation16]] [#allocation17]
          $region89: #{tpu_custom_call.1} parent=43 // pred_fallthru
            _
          %331 = shalt.err (0)
          %s333 = sshll.u32 [#allocation4], 4
          %s334 = int_to_ptr.vmem [resolvable:$true] %s333
          %336 = dma.hbm_to_vmem [thread:$0]  %s7, 2048, %s334, %s325
          %s337 = smul.u32 4, 1
          %s338 = smul.u32 %s337, 3
          %s339 = sshll.u32 %s338, 4
          %340 = dma.done [#allocation5], %s339
          %s341 = smul.u32 8, 16
          %s342 = smul.u32 %s341, 3
          %s343 = sshll.u32 %s342, 4
          %344 = dma.done %s313, %s343
          %s345 = smul.u32 128, 1
          %s346 = sshll.u32 %s345, 4
          %347 = dma.done %s325, %s346
          %v348 = vld [vmem:[%s1] sm:$0xff]
          %349 = vst [vmem:[#allocation7] sm:$0xff] %v348
        $region44: #{tpu_custom_call.1} parent=39 // pred_fallthru
          _
        %v350 = vld [vmem:[%s252] sm:$0xff]
        %v351 = vld [vmem:[%s252 + $0x8] sm:$0xff]
        %v352 = vld [vmem:[%s252 + $0x10] sm:$0xff]
        %v353 = vld [vmem:[%s252 + $0x18] sm:$0xff]
        %v354 = vld [vmem:[#allocation2] sm:$0xff]
        %v355 = vld [vmem:[#allocation2 + $0x8] sm:$0xf]
        %v356 = vld [vmem:[%s2] sm:$0x7]
        %v358 = vlaneseq
        %v359 = vshrl.u32 %v358, 7
        %v360 = vsub.s32 0, %v359
        %v361 = vrot.slane %v356, %v360
        %v362 = vlaneseq
        %v363 = vshrl.u32 %v362, 7
        %v364 = vsub.s32 1, %v363
        %v365 = vrot.slane %v356, %v364
        %v366 = vlaneseq
        %v367 = vshrl.u32 %v366, 7
        %v368 = vsub.s32 2, %v367
        %v369 = vrot.slane %v356, %v368
        %v375 = vcombine.high %v354, %v354
        %vm376 = vcmask 31744
        %v378 = vsel %vm376, %v350, 0
        %v381 = vsel %vm376, %v351, 0
        %v384 = vsel %vm376, %v352, 0
        %v387 = vsel %vm376, %v353, 0
        %vm389 = vcmask 1043456
        %v390 = vsel %vm389, %v354, 0
        %v392 = vsel %vm389, %v375, 0
        %v394 = vsel %vm389, %v355, 0
        %396 = vmatprep.subr.mxu0 %v392
        %397 = vmatpush1.msra.mxu0 %v390
        %398 = vmatprep.subr.mxu0 0.0
        %399 = vmatpush1.msra.mxu0 0.0
        %400 = vmatprep.subr.mxu0 0.0
        %401 = vmatpush1.msra.mxu0 0.0
        %402 = vmatprep.subr.mxu0 0.0
        %403 = vmatpush1.msra.mxu0 0.0
        %404 = vmatprep.subr.mxu0 0.0
        %405 = vmatpush1.msra.mxu0 0.0
        %406 = vmatprep.subr.mxu0 0.0
        %407 = vmatpush1.msra.mxu0 0.0
        %408 = vmatprep.subr.mxu0 0.0
        %409 = vmatpush1.msra.mxu0 0.0
        %410 = vmatprep.subr.mxu0 0.0
        %411 = vmatpush1.msra.mxu0 0.0
        %412 = vmatprep.subr.mxu0 0.0
        %413 = vmatpush1.msra.mxu0 0.0
        %414 = vmatprep.subr.mxu0 0.0
        %415 = vmatpush1.msra.mxu0 0.0
        %416 = vmatprep.subr.mxu0 0.0
        %417 = vmatpush1.msra.mxu0 0.0
        %418 = vmatprep.subr.mxu0 0.0
        %419 = vmatpush1.msra.mxu0 0.0
        %420 = vmatprep.subr.mxu0 0.0
        %421 = vmatpush1.msra.mxu0 0.0
        %422 = vmatprep.subr.mxu0 0.0
        %423 = vmatpush1.msra.mxu0 0.0
        %424 = vmatprep.subr.mxu0 0.0
        %425 = vmatpush1.msra.mxu0 0.0
        %426 = vmatprep.subr.mxu0 0.0
        %427 = vmatpush1.msra.mxu0 0.0
        %428 = vmatprep.subr.mxu0 0.0
        %429 = vmatpush1.msra.mxu0 0.0
        %430 = vmatprep.subr.mxu0 0.0
        %431 = vmatpush1.msra.mxu0 0.0
        %432 = vmatprep.subr.mxu0 0.0
        %433 = vmatpush1.msra.mxu0 0.0
        %434 = vmatprep.subr.mxu0 0.0
        %435 = vmatpush1.msra.mxu0 0.0
        %436 = vmatprep.subr.mxu0 0.0
        %437 = vmatpush1.msra.mxu0 0.0
        %438 = vmatprep.subr.mxu0 0.0
        %439 = vmatpush1.msra.mxu0 0.0
        %440 = vmatprep.subr.mxu0 0.0
        %441 = vmatpush1.msra.mxu0 0.0
        %442 = vmatprep.subr.mxu0 0.0
        %443 = vmatpush1.msra.mxu0 0.0
        %444 = vmatprep.subr.mxu0 0.0
        %445 = vmatpush1.msra.mxu0 0.0
        %446 = vmatprep.subr.mxu0 0.0
        %447 = vmatpush1.msra.mxu0 0.0
        %448 = vmatprep.subr.mxu0 0.0
        %449 = vmatpush1.msra.mxu0 0.0
        %450 = vmatprep.subr.mxu0 0.0
        %451 = vmatpush1.msra.mxu0 0.0
        %452 = vmatprep.subr.mxu0 0.0
        %453 = vmatpush1.msra.mxu0 0.0
        %454 = vmatprep.subr.mxu0 0.0
        %455 = vmatpush1.msra.mxu0 0.0
        %456 = vmatprep.subr.mxu0 0.0
        %457 = vmatpush1.msra.mxu0 0.0
        %458 = vmatprep.subr.mxu0 0.0
        %459 = vmatpush1.msra.mxu0 0.0
        %460 = vmatprep.mubr.f32.mxu0 0.0
        %461 = vmatmul.mubr.f32.gmra.mrb[0].mxu0 %v378
        %v462 = vpop.f32.mrb[0].mxu0
        %v463 = vadd.f32 %v361, %v462
        %v464 = vpop.f32.mrb[0].mxu0
        %v465 = vadd.f32 %v365, %v464
        %466 = vmatprep.mubr.f32.mxu0 0.0
        %467 = vmatmul.mubr.f32.gmra.mrb[0].mxu0 %v381
        %v468 = vpop.f32.mrb[0].mxu0
        %v469 = vadd.f32 %v361, %v468
        %v470 = vpop.f32.mrb[0].mxu0
        %v471 = vadd.f32 %v365, %v470
        %472 = vmatprep.mubr.f32.mxu0 0.0
        %473 = vmatmul.mubr.f32.gmra.mrb[0].mxu0 %v384
        %v474 = vpop.f32.mrb[0].mxu0
        %v475 = vadd.f32 %v361, %v474
        %v476 = vpop.f32.mrb[0].mxu0
        %v477 = vadd.f32 %v365, %v476
        %478 = vmatprep.mubr.f32.mxu0 0.0
        %479 = vmatmul.mubr.f32.gmra.mrb[0].mxu0 %v387
        %v480 = vpop.f32.mrb[0].mxu0
        %v481 = vadd.f32 %v361, %v480
        %v482 = vpop.f32.mrb[0].mxu0
        %v483 = vadd.f32 %v365, %v482
        %484 = vdwg.mxu0
        %485 = vmatprep.subr.mxu0 0.0
        %486 = vmatpush1.msra.mxu0 %v394
        %487 = vmatprep.subr.mxu0 0.0
        %488 = vmatpush1.msra.mxu0 0.0
        %489 = vmatprep.subr.mxu0 0.0
        %490 = vmatpush1.msra.mxu0 0.0
        %491 = vmatprep.subr.mxu0 0.0
        %492 = vmatpush1.msra.mxu0 0.0
        %493 = vmatprep.subr.mxu0 0.0
        %494 = vmatpush1.msra.mxu0 0.0
        %495 = vmatprep.subr.mxu0 0.0
        %496 = vmatpush1.msra.mxu0 0.0
        %497 = vmatprep.subr.mxu0 0.0
        %498 = vmatpush1.msra.mxu0 0.0
        %499 = vmatprep.subr.mxu0 0.0
        %500 = vmatpush1.msra.mxu0 0.0
        %501 = vmatprep.subr.mxu0 0.0
        %502 = vmatpush1.msra.mxu0 0.0
        %503 = vmatprep.subr.mxu0 0.0
        %504 = vmatpush1.msra.mxu0 0.0
        %505 = vmatprep.subr.mxu0 0.0
        %506 = vmatpush1.msra.mxu0 0.0
        %507 = vmatprep.subr.mxu0 0.0
        %508 = vmatpush1.msra.mxu0 0.0
        %509 = vmatprep.subr.mxu0 0.0
        %510 = vmatpush1.msra.mxu0 0.0
        %511 = vmatprep.subr.mxu0 0.0
        %512 = vmatpush1.msra.mxu0 0.0
        %513 = vmatprep.subr.mxu0 0.0
        %514 = vmatpush1.msra.mxu0 0.0
        %515 = vmatprep.subr.mxu0 0.0
        %516 = vmatpush1.msra.mxu0 0.0
        %517 = vmatprep.subr.mxu0 0.0
        %518 = vmatpush1.msra.mxu0 0.0
        %519 = vmatprep.subr.mxu0 0.0
        %520 = vmatpush1.msra.mxu0 0.0
        %521 = vmatprep.subr.mxu0 0.0
        %522 = vmatpush1.msra.mxu0 0.0
        %523 = vmatprep.subr.mxu0 0.0
        %524 = vmatpush1.msra.mxu0 0.0
        %525 = vmatprep.subr.mxu0 0.0
        %526 = vmatpush1.msra.mxu0 0.0
        %527 = vmatprep.subr.mxu0 0.0
        %528 = vmatpush1.msra.mxu0 0.0
        %529 = vmatprep.subr.mxu0 0.0
        %530 = vmatpush1.msra.mxu0 0.0
        %531 = vmatprep.subr.mxu0 0.0
        %532 = vmatpush1.msra.mxu0 0.0
        %533 = vmatprep.subr.mxu0 0.0
        %534 = vmatpush1.msra.mxu0 0.0
        %535 = vmatprep.subr.mxu0 0.0
        %536 = vmatpush1.msra.mxu0 0.0
        %537 = vmatprep.subr.mxu0 0.0
        %538 = vmatpush1.msra.mxu0 0.0
        %539 = vmatprep.subr.mxu0 0.0
        %540 = vmatpush1.msra.mxu0 0.0
        %541 = vmatprep.subr.mxu0 0.0
        %542 = vmatpush1.msra.mxu0 0.0
        %543 = vmatprep.subr.mxu0 0.0
        %544 = vmatpush1.msra.mxu0 0.0
        %545 = vmatprep.subr.mxu0 0.0
        %546 = vmatpush1.msra.mxu0 0.0
        %547 = vmatprep.subr.mxu0 0.0
        %548 = vmatpush1.msra.mxu0 0.0
        %549 = vmatprep.mubr.f32.mxu0 0.0
        %550 = vmatmul.mubr.f32.gmra.mrb[0].mxu0 %v378
        %v551 = vpop.f32.mrb[0].mxu0
        %v552 = vadd.f32 %v369, %v551
        %v553 = vpop.f32.mrb[0].mxu0
        %554 = vmatprep.mubr.f32.mxu0 0.0
        %555 = vmatmul.mubr.f32.gmra.mrb[0].mxu0 %v381
        %v556 = vpop.f32.mrb[0].mxu0
        %v557 = vadd.f32 %v369, %v556
        %v558 = vpop.f32.mrb[0].mxu0
        %559 = vmatprep.mubr.f32.mxu0 0.0
        %560 = vmatmul.mubr.f32.gmra.mrb[0].mxu0 %v384
        %v561 = vpop.f32.mrb[0].mxu0
        %v562 = vadd.f32 %v369, %v561
        %v563 = vpop.f32.mrb[0].mxu0
        %564 = vmatprep.mubr.f32.mxu0 0.0
        %565 = vmatmul.mubr.f32.gmra.mrb[0].mxu0 %v387
        %v566 = vpop.f32.mrb[0].mxu0
        %v567 = vadd.f32 %v369, %v566
        %v568 = vpop.f32.mrb[0].mxu0
        %569 = vdwg.mxu0
        %570 = vst [vmem:[#allocation6] sm:$0xff] %v463
        %571 = vst [vmem:[#allocation6 + $0x8] sm:$0xff] %v465
        %572 = vst [vmem:[#allocation6 + $0x10] sm:$0xff] %v552
        %573 = vst [vmem:[#allocation6 + $0x18] sm:$0xff] %v469
        %574 = vst [vmem:[#allocation6 + $0x20] sm:$0xff] %v471
        %575 = vst [vmem:[#allocation6 + $0x28] sm:$0xff] %v557
        %576 = vst [vmem:[#allocation6 + $0x30] sm:$0xff] %v475
        %577 = vst [vmem:[#allocation6 + $0x38] sm:$0xff] %v477
        %578 = vst [vmem:[#allocation6 + $0x40] sm:$0xff] %v562
        %579 = vst [vmem:[#allocation6 + $0x48] sm:$0xff] %v481
        %580 = vst [vmem:[#allocation6 + $0x50] sm:$0xff] %v483
        %581 = vst [vmem:[#allocation6 + $0x58] sm:$0xff] %v567
        %v582 = vld [vmem:[#allocation3] sm:$0xff]
        %v583 = vld [vmem:[#allocation3 + $0x8] sm:$0xff]
        %v584 = vld [vmem:[#allocation3 + $0x10] sm:$0xff]
        %v585 = vld [vmem:[#allocation3 + $0x18] sm:$0xff]
        %v586 = vld [vmem:[#allocation3 + $0x20] sm:$0xff]
        %v587 = vld [vmem:[#allocation3 + $0x28] sm:$0xff]
        %v588 = vld [vmem:[#allocation3 + $0x30] sm:$0xff]
        %v589 = vld [vmem:[#allocation3 + $0x38] sm:$0xff]
        %v590 = vld [vmem:[#allocation3 + $0x40] sm:$0xff]
        %v591 = vld [vmem:[#allocation3 + $0x48] sm:$0xff]
        %v592 = vld [vmem:[#allocation3 + $0x50] sm:$0xff]
        %v593 = vld [vmem:[#allocation3 + $0x58] sm:$0xff]
        %v594 = vld [vmem:[#allocation3 + $0x60] sm:$0xff]
        %v595 = vld [vmem:[#allocation3 + $0x68] sm:$0xff]
        %v596 = vld [vmem:[#allocation3 + $0x70] sm:$0xff]
        %v597 = vld [vmem:[#allocation3 + $0x78] sm:$0xff]
        %v598 = vld [vmem:[#allocation3 + $0x80] sm:$0xff]
        %v599 = vld [vmem:[#allocation3 + $0x88] sm:$0xff]
        %v600 = vld [vmem:[#allocation3 + $0x90] sm:$0xff]
        %v601 = vld [vmem:[#allocation3 + $0x98] sm:$0xff]
        %v602 = vld [vmem:[#allocation3 + $0xa0] sm:$0xff]
        %v603 = vld [vmem:[#allocation3 + $0xa8] sm:$0xff]
        %v604 = vld [vmem:[#allocation3 + $0xb0] sm:$0xff]
        %v605 = vld [vmem:[#allocation3 + $0xb8] sm:$0xff]
        %v606 = vld [vmem:[#allocation3 + $0xc0] sm:$0xff]
        %v607 = vld [vmem:[#allocation3 + $0xc8] sm:$0xff]
        %v608 = vld [vmem:[#allocation3 + $0xd0] sm:$0xff]
        %v609 = vld [vmem:[#allocation3 + $0xd8] sm:$0xff]
        %v610 = vld [vmem:[#allocation3 + $0xe0] sm:$0xff]
        %v611 = vld [vmem:[#allocation3 + $0xe8] sm:$0xff]
        %v612 = vld [vmem:[#allocation3 + $0xf0] sm:$0xff]
        %v613 = vld [vmem:[#allocation3 + $0xf8] sm:$0xff]
        %v614 = vld [vmem:[#allocation3 + $0x100] sm:$0xff]
        %v615 = vld [vmem:[#allocation3 + $0x108] sm:$0xff]
        %v616 = vld [vmem:[#allocation3 + $0x110] sm:$0xff]
        %v617 = vld [vmem:[#allocation3 + $0x118] sm:$0xff]
        %v618 = vld [vmem:[#allocation3 + $0x120] sm:$0xff]
        %v619 = vld [vmem:[#allocation3 + $0x128] sm:$0xff]
        %v620 = vld [vmem:[#allocation3 + $0x130] sm:$0xff]
        %v621 = vld [vmem:[#allocation3 + $0x138] sm:$0xff]
        %v622 = vld [vmem:[#allocation3 + $0x140] sm:$0xff]
        %v623 = vld [vmem:[#allocation3 + $0x148] sm:$0xff]
        %v624 = vld [vmem:[#allocation3 + $0x150] sm:$0xff]
        %v625 = vld [vmem:[#allocation3 + $0x158] sm:$0xff]
        %v626 = vld [vmem:[#allocation3 + $0x160] sm:$0xff]
        %v627 = vld [vmem:[#allocation3 + $0x168] sm:$0xff]
        %v628 = vld [vmem:[#allocation3 + $0x170] sm:$0xff]
        %v629 = vld [vmem:[#allocation3 + $0x178] sm:$0xff]
        %v630 = vld [vmem:[#allocation4] sm:$0xff]
        %v631 = vld [vmem:[#allocation4 + $0x8] sm:$0xff]
        %v632 = vld [vmem:[#allocation4 + $0x10] sm:$0xff]
        %v633 = vld [vmem:[#allocation4 + $0x18] sm:$0xff]
        %v634 = vld [vmem:[#allocation4 + $0x20] sm:$0xff]
        %v635 = vld [vmem:[#allocation4 + $0x28] sm:$0xff]
        %v636 = vld [vmem:[#allocation4 + $0x30] sm:$0xff]
        %v637 = vld [vmem:[#allocation4 + $0x38] sm:$0xff]
        %v638 = vld [vmem:[#allocation4 + $0x40] sm:$0xff]
        %v639 = vld [vmem:[#allocation4 + $0x48] sm:$0xff]
        %v640 = vld [vmem:[#allocation4 + $0x50] sm:$0xff]
        %v641 = vld [vmem:[#allocation4 + $0x58] sm:$0xff]
        %v642 = vld [vmem:[#allocation4 + $0x60] sm:$0xff]
        %v643 = vld [vmem:[#allocation4 + $0x68] sm:$0xff]
        %v644 = vld [vmem:[#allocation4 + $0x70] sm:$0xff]
        %v645 = vld [vmem:[#allocation4 + $0x78] sm:$0xff]
        %v646 = vld [vmem:[%s3] sm:$0x1]
        %v647 = vld [vmem:[%s4] sm:$0x1]
        %v648 = vld [vmem:[#allocation7] sm:$0xff]
        %v649 = vld [vmem:[#allocation6] sm:$0xff]
        %v650 = vld [vmem:[#allocation6 + $0x8] sm:$0xff]
        %v651 = vld [vmem:[#allocation6 + $0x10] sm:$0xff]
        %652 = vmatprep.subr.mxu0 %v583
        %653 = vmatpush1.msra.mxu0 %v582
        %654 = vmatprep.subr.mxu0 %v586
        %655 = vmatpush1.msra.mxu0 %v585
        %656 = vmatprep.subr.mxu0 %v589
        %657 = vmatpush1.msra.mxu0 %v588
        %658 = vmatprep.subr.mxu0 %v592
        %659 = vmatpush1.msra.mxu0 %v591
        %660 = vmatprep.subr.mxu0 %v595
        %661 = vmatpush1.msra.mxu0 %v594
        %662 = vmatprep.subr.mxu0 %v598
        %663 = vmatpush1.msra.mxu0 %v597
        %664 = vmatprep.subr.mxu0 %v601
        %665 = vmatpush1.msra.mxu0 %v600
        %666 = vmatprep.subr.mxu0 %v604
        %667 = vmatpush1.msra.mxu0 %v603
        %668 = vmatprep.subr.mxu0 %v607
        %669 = vmatpush1.msra.mxu0 %v606
        %670 = vmatprep.subr.mxu0 %v610
        %671 = vmatpush1.msra.mxu0 %v609
        %672 = vmatprep.subr.mxu0 %v613
        %673 = vmatpush1.msra.mxu0 %v612
        %674 = vmatprep.subr.mxu0 %v616
        %675 = vmatpush1.msra.mxu0 %v615
        %676 = vmatprep.subr.mxu0 %v619
        %677 = vmatpush1.msra.mxu0 %v618
        %678 = vmatprep.subr.mxu0 %v622
        %679 = vmatpush1.msra.mxu0 %v621
        %680 = vmatprep.subr.mxu0 %v625
        %681 = vmatpush1.msra.mxu0 %v624
        %682 = vmatprep.subr.mxu0 %v628
        %683 = vmatpush1.msra.mxu0 %v627
        %684 = vmatprep.subr.mxu0 0.0
        %685 = vmatpush1.msra.mxu0 0.0
        %686 = vmatprep.subr.mxu0 0.0
        %687 = vmatpush1.msra.mxu0 0.0
        %688 = vmatprep.subr.mxu0 0.0
        %689 = vmatpush1.msra.mxu0 0.0
        %690 = vmatprep.subr.mxu0 0.0
        %691 = vmatpush1.msra.mxu0 0.0
        %692 = vmatprep.subr.mxu0 0.0
        %693 = vmatpush1.msra.mxu0 0.0
        %694 = vmatprep.subr.mxu0 0.0
        %695 = vmatpush1.msra.mxu0 0.0
        %696 = vmatprep.subr.mxu0 0.0
        %697 = vmatpush1.msra.mxu0 0.0
        %698 = vmatprep.subr.mxu0 0.0
        %699 = vmatpush1.msra.mxu0 0.0
        %700 = vmatprep.subr.mxu0 0.0
        %701 = vmatpush1.msra.mxu0 0.0
        %702 = vmatprep.subr.mxu0 0.0
        %703 = vmatpush1.msra.mxu0 0.0
        %704 = vmatprep.subr.mxu0 0.0
        %705 = vmatpush1.msra.mxu0 0.0
        %706 = vmatprep.subr.mxu0 0.0
        %707 = vmatpush1.msra.mxu0 0.0
        %708 = vmatprep.subr.mxu0 0.0
        %709 = vmatpush1.msra.mxu0 0.0
        %710 = vmatprep.subr.mxu0 0.0
        %711 = vmatpush1.msra.mxu0 0.0
        %712 = vmatprep.subr.mxu0 0.0
        %713 = vmatpush1.msra.mxu0 0.0
        %714 = vmatprep.subr.mxu0 0.0
        %715 = vmatpush1.msra.mxu0 0.0
        %716 = vmatprep.mubr.f32.mxu0 0.0
        %717 = vmatmul.mubr.f32.gmra.mrb[0].mxu0 %v648
        %v718 = vpop.f32.mrb[0].mxu0
        %v719 = vadd.f32 0.0, %v718
        %v720 = vpop.f32.mrb[0].mxu0
        %v721 = vadd.f32 0.0, %v720
        %722 = vdwg.mxu0
        %723 = vmatprep.subr.mxu0 0.0
        %724 = vmatpush1.msra.mxu0 %v584
        %725 = vmatprep.subr.mxu0 0.0
        %726 = vmatpush1.msra.mxu0 %v587
        %727 = vmatprep.subr.mxu0 0.0
        %728 = vmatpush1.msra.mxu0 %v590
        %729 = vmatprep.subr.mxu0 0.0
        %730 = vmatpush1.msra.mxu0 %v593
        %731 = vmatprep.subr.mxu0 0.0
        %732 = vmatpush1.msra.mxu0 %v596
        %733 = vmatprep.subr.mxu0 0.0
        %734 = vmatpush1.msra.mxu0 %v599
        %735 = vmatprep.subr.mxu0 0.0
        %736 = vmatpush1.msra.mxu0 %v602
        %737 = vmatprep.subr.mxu0 0.0
        %738 = vmatpush1.msra.mxu0 %v605
        %739 = vmatprep.subr.mxu0 0.0
        %740 = vmatpush1.msra.mxu0 %v608
        %741 = vmatprep.subr.mxu0 0.0
        %742 = vmatpush1.msra.mxu0 %v611
        %743 = vmatprep.subr.mxu0 0.0
        %744 = vmatpush1.msra.mxu0 %v614
        %745 = vmatprep.subr.mxu0 0.0
        %746 = vmatpush1.msra.mxu0 %v617
        %747 = vmatprep.subr.mxu0 0.0
        %748 = vmatpush1.msra.mxu0 %v620
        %749 = vmatprep.subr.mxu0 0.0
        %750 = vmatpush1.msra.mxu0 %v623
        %751 = vmatprep.subr.mxu0 0.0
        %752 = vmatpush1.msra.mxu0 %v626
        %753 = vmatprep.subr.mxu0 0.0
        %754 = vmatpush1.msra.mxu0 %v629
        %755 = vmatprep.subr.mxu0 0.0
        %756 = vmatpush1.msra.mxu0 0.0
        %757 = vmatprep.subr.mxu0 0.0
        %758 = vmatpush1.msra.mxu0 0.0
        %759 = vmatprep.subr.mxu0 0.0
        %760 = vmatpush1.msra.mxu0 0.0
        %761 = vmatprep.subr.mxu0 0.0
        %762 = vmatpush1.msra.mxu0 0.0
        %763 = vmatprep.subr.mxu0 0.0
        %764 = vmatpush1.msra.mxu0 0.0
        %765 = vmatprep.subr.mxu0 0.0
        %766 = vmatpush1.msra.mxu0 0.0
        %767 = vmatprep.subr.mxu0 0.0
        %768 = vmatpush1.msra.mxu0 0.0
        %769 = vmatprep.subr.mxu0 0.0
        %770 = vmatpush1.msra.mxu0 0.0
        %771 = vmatprep.subr.mxu0 0.0
        %772 = vmatpush1.msra.mxu0 0.0
        %773 = vmatprep.subr.mxu0 0.0
        %774 = vmatpush1.msra.mxu0 0.0
        %775 = vmatprep.subr.mxu0 0.0
        %776 = vmatpush1.msra.mxu0 0.0
        %777 = vmatprep.subr.mxu0 0.0
        %778 = vmatpush1.msra.mxu0 0.0
        %779 = vmatprep.subr.mxu0 0.0
        %780 = vmatpush1.msra.mxu0 0.0
        %781 = vmatprep.subr.mxu0 0.0
        %782 = vmatpush1.msra.mxu0 0.0
        %783 = vmatprep.subr.mxu0 0.0
        %784 = vmatpush1.msra.mxu0 0.0
        %785 = vmatprep.subr.mxu0 0.0
        %786 = vmatpush1.msra.mxu0 0.0
        %787 = vmatprep.mubr.f32.mxu0 0.0
        %788 = vmatmul.mubr.f32.gmra.mrb[0].mxu0 %v648
        %v789 = vpop.f32.mrb[0].mxu0
        %v790 = vadd.f32 0.0, %v789
        %v791 = vpop.f32.mrb[0].mxu0
        %792 = vdwg.mxu0
        %v793 = vadd.f32 %v649, %v719
        %v794 = vxor.u32 %v793, 2147483648
        %v795 = vmul.f32 %v794, 1.442695
        %v796 = vpow.pop %v795
        %v797 = vadd.f32 %v796, 1.0
        %v798 = vrcp.pop %v797
        %v799 = vmul.f32 1.0, %v798
        %v800 = vadd.f32 %v650, %v721
        %v801 = vxor.u32 %v800, 2147483648
        %v802 = vmul.f32 %v801, 1.442695
        %v803 = vpow.pop %v802
        %v804 = vadd.f32 %v803, 1.0
        %v805 = vrcp.pop %v804
        %v806 = vmul.f32 1.0, %v805
        %v808 = vlaneseq
        %v809 = vshrl.u32 %v808, 7
        %v810 = vsub.s32 0, %v809
        %v811 = vrot.slane %v646, %v810
        %v813 = vadd.f32 %v790, %v811
        %v814 = vmul.f32 %v799, %v813
        %v815 = vadd.f32 %v651, %v814
        %v816 = vtanh.pop %v815
        %v817 = vsub.f32 1.0, %v806
        %v818 = vmul.f32 %v817, %v816
        %v819 = vmul.f32 %v806, %v648
        %v820 = vadd.f32 %v818, %v819
        %v822 = vlaneseq
        %v823 = vshrl.u32 %v822, 7
        %v824 = vsub.s32 0, %v823
        %v825 = vrot.slane %v647, %v824
        %827 = vmatprep.subr.mxu0 0.0
        %828 = vmatpush1.msra.mxu0 %v630
        %829 = vmatprep.subr.mxu0 0.0
        %830 = vmatpush1.msra.mxu0 %v631
        %831 = vmatprep.subr.mxu0 0.0
        %832 = vmatpush1.msra.mxu0 %v632
        %833 = vmatprep.subr.mxu0 0.0
        %834 = vmatpush1.msra.mxu0 %v633
        %835 = vmatprep.subr.mxu0 0.0
        %836 = vmatpush1.msra.mxu0 %v634
        %837 = vmatprep.subr.mxu0 0.0
        %838 = vmatpush1.msra.mxu0 %v635
        %839 = vmatprep.subr.mxu0 0.0
        %840 = vmatpush1.msra.mxu0 %v636
        %841 = vmatprep.subr.mxu0 0.0
        %842 = vmatpush1.msra.mxu0 %v637
        %843 = vmatprep.subr.mxu0 0.0
        %844 = vmatpush1.msra.mxu0 %v638
        %845 = vmatprep.subr.mxu0 0.0
        %846 = vmatpush1.msra.mxu0 %v639
        %847 = vmatprep.subr.mxu0 0.0
        %848 = vmatpush1.msra.mxu0 %v640
        %849 = vmatprep.subr.mxu0 0.0
        %850 = vmatpush1.msra.mxu0 %v641
        %851 = vmatprep.subr.mxu0 0.0
        %852 = vmatpush1.msra.mxu0 %v642
        %853 = vmatprep.subr.mxu0 0.0
        %854 = vmatpush1.msra.mxu0 %v643
        %855 = vmatprep.subr.mxu0 0.0
        %856 = vmatpush1.msra.mxu0 %v644
        %857 = vmatprep.subr.mxu0 0.0
        %858 = vmatpush1.msra.mxu0 %v645
        %859 = vmatprep.subr.mxu0 0.0
        %860 = vmatpush1.msra.mxu0 0.0
        %861 = vmatprep.subr.mxu0 0.0
        %862 = vmatpush1.msra.mxu0 0.0
        %863 = vmatprep.subr.mxu0 0.0
        %864 = vmatpush1.msra.mxu0 0.0
        %865 = vmatprep.subr.mxu0 0.0
        %866 = vmatpush1.msra.mxu0 0.0
        %867 = vmatprep.subr.mxu0 0.0
        %868 = vmatpush1.msra.mxu0 0.0
        %869 = vmatprep.subr.mxu0 0.0
        %870 = vmatpush1.msra.mxu0 0.0
        %871 = vmatprep.subr.mxu0 0.0
        %872 = vmatpush1.msra.mxu0 0.0
        %873 = vmatprep.subr.mxu0 0.0
        %874 = vmatpush1.msra.mxu0 0.0
        %875 = vmatprep.subr.mxu0 0.0
        %876 = vmatpush1.msra.mxu0 0.0
        %877 = vmatprep.subr.mxu0 0.0
        %878 = vmatpush1.msra.mxu0 0.0
        %879 = vmatprep.subr.mxu0 0.0
        %880 = vmatpush1.msra.mxu0 0.0
        %881 = vmatprep.subr.mxu0 0.0
        %882 = vmatpush1.msra.mxu0 0.0
        %883 = vmatprep.subr.mxu0 0.0
        %884 = vmatpush1.msra.mxu0 0.0
        %885 = vmatprep.subr.mxu0 0.0
        %886 = vmatpush1.msra.mxu0 0.0
        %887 = vmatprep.subr.mxu0 0.0
        %888 = vmatpush1.msra.mxu0 0.0
        %889 = vmatprep.subr.mxu0 0.0
        %890 = vmatpush1.msra.mxu0 0.0
        %891 = vmatprep.mubr.f32.mxu0 0.0
        %892 = vmatmul.mubr.f32.gmra.mrb[0].mxu0 %v820
        %v893 = vpop.f32.mrb[0].mxu0
        %v894 = vadd.f32 %v825, %v893
        %v895 = vpop.f32.mrb[0].mxu0
        %896 = vdwg.mxu0
        %897 = vst [vmem:[%s245] sm:$0xff] %v894
        %s898 = scalar_lea.vmem [#allocation6], 24
        %v899 = vld [vmem:[%s898] sm:$0xff]
        %v900 = vld [vmem:[%s898 + $0x8] sm:$0xff]
        %v901 = vld [vmem:[%s898 + $0x10] sm:$0xff]
        %902 = vmatprep.subr.mxu0 %v583
        %903 = vmatpush1.msra.mxu0 %v582
        %904 = vmatprep.subr.mxu0 %v586
        %905 = vmatpush1.msra.mxu0 %v585
        %906 = vmatprep.subr.mxu0 %v589
        %907 = vmatpush1.msra.mxu0 %v588
        %908 = vmatprep.subr.mxu0 %v592
        %909 = vmatpush1.msra.mxu0 %v591
        %910 = vmatprep.subr.mxu0 %v595
        %911 = vmatpush1.msra.mxu0 %v594
        %912 = vmatprep.subr.mxu0 %v598
        %913 = vmatpush1.msra.mxu0 %v597
        %914 = vmatprep.subr.mxu0 %v601
        %915 = vmatpush1.msra.mxu0 %v600
        %916 = vmatprep.subr.mxu0 %v604
        %917 = vmatpush1.msra.mxu0 %v603
        %918 = vmatprep.subr.mxu0 %v607
        %919 = vmatpush1.msra.mxu0 %v606
        %920 = vmatprep.subr.mxu0 %v610
        %921 = vmatpush1.msra.mxu0 %v609
        %922 = vmatprep.subr.mxu0 %v613
        %923 = vmatpush1.msra.mxu0 %v612
        %924 = vmatprep.subr.mxu0 %v616
        %925 = vmatpush1.msra.mxu0 %v615
        %926 = vmatprep.subr.mxu0 %v619
        %927 = vmatpush1.msra.mxu0 %v618
        %928 = vmatprep.subr.mxu0 %v622
        %929 = vmatpush1.msra.mxu0 %v621
        %930 = vmatprep.subr.mxu0 %v625
        %931 = vmatpush1.msra.mxu0 %v624
        %932 = vmatprep.subr.mxu0 %v628
        %933 = vmatpush1.msra.mxu0 %v627
        %934 = vmatprep.subr.mxu0 0.0
        %935 = vmatpush1.msra.mxu0 0.0
        %936 = vmatprep.subr.mxu0 0.0
        %937 = vmatpush1.msra.mxu0 0.0
        %938 = vmatprep.subr.mxu0 0.0
        %939 = vmatpush1.msra.mxu0 0.0
        %940 = vmatprep.subr.mxu0 0.0
        %941 = vmatpush1.msra.mxu0 0.0
        %942 = vmatprep.subr.mxu0 0.0
        %943 = vmatpush1.msra.mxu0 0.0
        %944 = vmatprep.subr.mxu0 0.0
        %945 = vmatpush1.msra.mxu0 0.0
        %946 = vmatprep.subr.mxu0 0.0
        %947 = vmatpush1.msra.mxu0 0.0
        %948 = vmatprep.subr.mxu0 0.0
        %949 = vmatpush1.msra.mxu0 0.0
        %950 = vmatprep.subr.mxu0 0.0
        %951 = vmatpush1.msra.mxu0 0.0
        %952 = vmatprep.subr.mxu0 0.0
        %953 = vmatpush1.msra.mxu0 0.0
        %954 = vmatprep.subr.mxu0 0.0
        %955 = vmatpush1.msra.mxu0 0.0
        %956 = vmatprep.subr.mxu0 0.0
        %957 = vmatpush1.msra.mxu0 0.0
        %958 = vmatprep.subr.mxu0 0.0
        %959 = vmatpush1.msra.mxu0 0.0
        %960 = vmatprep.subr.mxu0 0.0
        %961 = vmatpush1.msra.mxu0 0.0
        %962 = vmatprep.subr.mxu0 0.0
        %963 = vmatpush1.msra.mxu0 0.0
        %964 = vmatprep.subr.mxu0 0.0
        %965 = vmatpush1.msra.mxu0 0.0
        %966 = vmatprep.mubr.f32.mxu0 0.0
        %967 = vmatmul.mubr.f32.gmra.mrb[0].mxu0 %v820
        %v968 = vpop.f32.mrb[0].mxu0
        %v969 = vadd.f32 0.0, %v968
        %v970 = vpop.f32.mrb[0].mxu0
        %v971 = vadd.f32 0.0, %v970
        %972 = vdwg.mxu0
        %973 = vmatprep.subr.mxu0 0.0
        %974 = vmatpush1.msra.mxu0 %v584
        %975 = vmatprep.subr.mxu0 0.0
        %976 = vmatpush1.msra.mxu0 %v587
        %977 = vmatprep.subr.mxu0 0.0
        %978 = vmatpush1.msra.mxu0 %v590
        %979 = vmatprep.subr.mxu0 0.0
        %980 = vmatpush1.msra.mxu0 %v593
        %981 = vmatprep.subr.mxu0 0.0
        %982 = vmatpush1.msra.mxu0 %v596
        %983 = vmatprep.subr.mxu0 0.0
        %984 = vmatpush1.msra.mxu0 %v599
        %985 = vmatprep.subr.mxu0 0.0
        %986 = vmatpush1.msra.mxu0 %v602
        %987 = vmatprep.subr.mxu0 0.0
        %988 = vmatpush1.msra.mxu0 %v605
        %989 = vmatprep.subr.mxu0 0.0
        %990 = vmatpush1.msra.mxu0 %v608
        %991 = vmatprep.subr.mxu0 0.0
        %992 = vmatpush1.msra.mxu0 %v611
        %993 = vmatprep.subr.mxu0 0.0
        %994 = vmatpush1.msra.mxu0 %v614
        %995 = vmatprep.subr.mxu0 0.0
        %996 = vmatpush1.msra.mxu0 %v617
        %997 = vmatprep.subr.mxu0 0.0
        %998 = vmatpush1.msra.mxu0 %v620
        %999 = vmatprep.subr.mxu0 0.0
        %1000 = vmatpush1.msra.mxu0 %v623
        %1001 = vmatprep.subr.mxu0 0.0
        %1002 = vmatpush1.msra.mxu0 %v626
        %1003 = vmatprep.subr.mxu0 0.0
        %1004 = vmatpush1.msra.mxu0 %v629
        %1005 = vmatprep.subr.mxu0 0.0
        %1006 = vmatpush1.msra.mxu0 0.0
        %1007 = vmatprep.subr.mxu0 0.0
        %1008 = vmatpush1.msra.mxu0 0.0
        %1009 = vmatprep.subr.mxu0 0.0
        %1010 = vmatpush1.msra.mxu0 0.0
        %1011 = vmatprep.subr.mxu0 0.0
        %1012 = vmatpush1.msra.mxu0 0.0
        %1013 = vmatprep.subr.mxu0 0.0
        %1014 = vmatpush1.msra.mxu0 0.0
        %1015 = vmatprep.subr.mxu0 0.0
        %1016 = vmatpush1.msra.mxu0 0.0
        %1017 = vmatprep.subr.mxu0 0.0
        %1018 = vmatpush1.msra.mxu0 0.0
        %1019 = vmatprep.subr.mxu0 0.0
        %1020 = vmatpush1.msra.mxu0 0.0
        %1021 = vmatprep.subr.mxu0 0.0
        %1022 = vmatpush1.msra.mxu0 0.0
        %1023 = vmatprep.subr.mxu0 0.0
        %1024 = vmatpush1.msra.mxu0 0.0
        %1025 = vmatprep.subr.mxu0 0.0
        %1026 = vmatpush1.msra.mxu0 0.0
        %1027 = vmatprep.subr.mxu0 0.0
        %1028 = vmatpush1.msra.mxu0 0.0
        %1029 = vmatprep.subr.mxu0 0.0
        %1030 = vmatpush1.msra.mxu0 0.0
        %1031 = vmatprep.subr.mxu0 0.0
        %1032 = vmatpush1.msra.mxu0 0.0
        %1033 = vmatprep.subr.mxu0 0.0
        %1034 = vmatpush1.msra.mxu0 0.0
        %1035 = vmatprep.subr.mxu0 0.0
        %1036 = vmatpush1.msra.mxu0 0.0
        %1037 = vmatprep.mubr.f32.mxu0 0.0
        %1038 = vmatmul.mubr.f32.gmra.mrb[0].mxu0 %v820
        %v1039 = vpop.f32.mrb[0].mxu0
        %v1040 = vadd.f32 0.0, %v1039
        %v1041 = vpop.f32.mrb[0].mxu0
        %1042 = vdwg.mxu0
        %v1043 = vadd.f32 %v899, %v969
        %v1044 = vxor.u32 %v1043, 2147483648
        %v1045 = vmul.f32 %v1044, 1.442695
        %v1046 = vpow.pop %v1045
        %v1047 = vadd.f32 %v1046, 1.0
        %v1048 = vrcp.pop %v1047
        %v1049 = vmul.f32 1.0, %v1048
        %v1050 = vadd.f32 %v900, %v971
        %v1051 = vxor.u32 %v1050, 2147483648
        %v1052 = vmul.f32 %v1051, 1.442695
        %v1053 = vpow.pop %v1052
        %v1054 = vadd.f32 %v1053, 1.0
        %v1055 = vrcp.pop %v1054
        %v1056 = vmul.f32 1.0, %v1055
        %v1057 = vadd.f32 %v1040, %v811
        %v1058 = vmul.f32 %v1049, %v1057
        %v1059 = vadd.f32 %v901, %v1058
        %v1060 = vtanh.pop %v1059
        %v1061 = vsub.f32 1.0, %v1056
        %v1062 = vmul.f32 %v1061, %v1060
        %v1063 = vmul.f32 %v1056, %v820
        %v1064 = vadd.f32 %v1062, %v1063
        %1065 = vmatprep.subr.mxu0 0.0
        %1066 = vmatpush1.msra.mxu0 %v630
        %1067 = vmatprep.subr.mxu0 0.0
        %1068 = vmatpush1.msra.mxu0 %v631
        %1069 = vmatprep.subr.mxu0 0.0
        %1070 = vmatpush1.msra.mxu0 %v632
        %1071 = vmatprep.subr.mxu0 0.0
        %1072 = vmatpush1.msra.mxu0 %v633
        %1073 = vmatprep.subr.mxu0 0.0
        %1074 = vmatpush1.msra.mxu0 %v634
        %1075 = vmatprep.subr.mxu0 0.0
        %1076 = vmatpush1.msra.mxu0 %v635
        %1077 = vmatprep.subr.mxu0 0.0
        %1078 = vmatpush1.msra.mxu0 %v636
        %1079 = vmatprep.subr.mxu0 0.0
        %1080 = vmatpush1.msra.mxu0 %v637
        %1081 = vmatprep.subr.mxu0 0.0
        %1082 = vmatpush1.msra.mxu0 %v638
        %1083 = vmatprep.subr.mxu0 0.0
        %1084 = vmatpush1.msra.mxu0 %v639
        %1085 = vmatprep.subr.mxu0 0.0
        %1086 = vmatpush1.msra.mxu0 %v640
        %1087 = vmatprep.subr.mxu0 0.0
        %1088 = vmatpush1.msra.mxu0 %v641
        %1089 = vmatprep.subr.mxu0 0.0
        %1090 = vmatpush1.msra.mxu0 %v642
        %1091 = vmatprep.subr.mxu0 0.0
        %1092 = vmatpush1.msra.mxu0 %v643
        %1093 = vmatprep.subr.mxu0 0.0
        %1094 = vmatpush1.msra.mxu0 %v644
        %1095 = vmatprep.subr.mxu0 0.0
        %1096 = vmatpush1.msra.mxu0 %v645
        %1097 = vmatprep.subr.mxu0 0.0
        %1098 = vmatpush1.msra.mxu0 0.0
        %1099 = vmatprep.subr.mxu0 0.0
        %1100 = vmatpush1.msra.mxu0 0.0
        %1101 = vmatprep.subr.mxu0 0.0
        %1102 = vmatpush1.msra.mxu0 0.0
        %1103 = vmatprep.subr.mxu0 0.0
        %1104 = vmatpush1.msra.mxu0 0.0
        %1105 = vmatprep.subr.mxu0 0.0
        %1106 = vmatpush1.msra.mxu0 0.0
        %1107 = vmatprep.subr.mxu0 0.0
        %1108 = vmatpush1.msra.mxu0 0.0
        %1109 = vmatprep.subr.mxu0 0.0
        %1110 = vmatpush1.msra.mxu0 0.0
        %1111 = vmatprep.subr.mxu0 0.0
        %1112 = vmatpush1.msra.mxu0 0.0
        %1113 = vmatprep.subr.mxu0 0.0
        %1114 = vmatpush1.msra.mxu0 0.0
        %1115 = vmatprep.subr.mxu0 0.0
        %1116 = vmatpush1.msra.mxu0 0.0
        %1117 = vmatprep.subr.mxu0 0.0
        %1118 = vmatpush1.msra.mxu0 0.0
        %1119 = vmatprep.subr.mxu0 0.0
        %1120 = vmatpush1.msra.mxu0 0.0
        %1121 = vmatprep.subr.mxu0 0.0
        %1122 = vmatpush1.msra.mxu0 0.0
        %1123 = vmatprep.subr.mxu0 0.0
        %1124 = vmatpush1.msra.mxu0 0.0
        %1125 = vmatprep.subr.mxu0 0.0
        %1126 = vmatpush1.msra.mxu0 0.0
        %1127 = vmatprep.subr.mxu0 0.0
        %1128 = vmatpush1.msra.mxu0 0.0
        %1129 = vmatprep.mubr.f32.mxu0 0.0
        %1130 = vmatmul.mubr.f32.gmra.mrb[0].mxu0 %v1064
        %v1131 = vpop.f32.mrb[0].mxu0
        %v1132 = vadd.f32 %v825, %v1131
        %v1133 = vpop.f32.mrb[0].mxu0
        %1134 = vdwg.mxu0
        %s1135 = scalar_lea.vmem %s245, 8 [#allocation8]
        %1136 = vst [vmem:[%s1135] sm:$0xff] %v1132
        %s1137 = scalar_lea.vmem [#allocation6], 48
        %v1138 = vld [vmem:[%s1137] sm:$0xff]
        %v1139 = vld [vmem:[%s1137 + $0x8] sm:$0xff]
        %v1140 = vld [vmem:[%s1137 + $0x10] sm:$0xff]
        %1141 = vmatprep.subr.mxu0 %v583
        %1142 = vmatpush1.msra.mxu0 %v582
        %1143 = vmatprep.subr.mxu0 %v586
        %1144 = vmatpush1.msra.mxu0 %v585
        %1145 = vmatprep.subr.mxu0 %v589
        %1146 = vmatpush1.msra.mxu0 %v588
        %1147 = vmatprep.subr.mxu0 %v592
        %1148 = vmatpush1.msra.mxu0 %v591
        %1149 = vmatprep.subr.mxu0 %v595
        %1150 = vmatpush1.msra.mxu0 %v594
        %1151 = vmatprep.subr.mxu0 %v598
        %1152 = vmatpush1.msra.mxu0 %v597
        %1153 = vmatprep.subr.mxu0 %v601
        %1154 = vmatpush1.msra.mxu0 %v600
        %1155 = vmatprep.subr.mxu0 %v604
        %1156 = vmatpush1.msra.mxu0 %v603
        %1157 = vmatprep.subr.mxu0 %v607
        %1158 = vmatpush1.msra.mxu0 %v606
        %1159 = vmatprep.subr.mxu0 %v610
        %1160 = vmatpush1.msra.mxu0 %v609
        %1161 = vmatprep.subr.mxu0 %v613
        %1162 = vmatpush1.msra.mxu0 %v612
        %1163 = vmatprep.subr.mxu0 %v616
        %1164 = vmatpush1.msra.mxu0 %v615
        %1165 = vmatprep.subr.mxu0 %v619
        %1166 = vmatpush1.msra.mxu0 %v618
        %1167 = vmatprep.subr.mxu0 %v622
        %1168 = vmatpush1.msra.mxu0 %v621
        %1169 = vmatprep.subr.mxu0 %v625
        %1170 = vmatpush1.msra.mxu0 %v624
        %1171 = vmatprep.subr.mxu0 %v628
        %1172 = vmatpush1.msra.mxu0 %v627
        %1173 = vmatprep.subr.mxu0 0.0
        %1174 = vmatpush1.msra.mxu0 0.0
        %1175 = vmatprep.subr.mxu0 0.0
        %1176 = vmatpush1.msra.mxu0 0.0
        %1177 = vmatprep.subr.mxu0 0.0
        %1178 = vmatpush1.msra.mxu0 0.0
        %1179 = vmatprep.subr.mxu0 0.0
        %1180 = vmatpush1.msra.mxu0 0.0
        %1181 = vmatprep.subr.mxu0 0.0
        %1182 = vmatpush1.msra.mxu0 0.0
        %1183 = vmatprep.subr.mxu0 0.0
        %1184 = vmatpush1.msra.mxu0 0.0
        %1185 = vmatprep.subr.mxu0 0.0
        %1186 = vmatpush1.msra.mxu0 0.0
        %1187 = vmatprep.subr.mxu0 0.0
        %1188 = vmatpush1.msra.mxu0 0.0
        %1189 = vmatprep.subr.mxu0 0.0
        %1190 = vmatpush1.msra.mxu0 0.0
        %1191 = vmatprep.subr.mxu0 0.0
        %1192 = vmatpush1.msra.mxu0 0.0
        %1193 = vmatprep.subr.mxu0 0.0
        %1194 = vmatpush1.msra.mxu0 0.0
        %1195 = vmatprep.subr.mxu0 0.0
        %1196 = vmatpush1.msra.mxu0 0.0
        %1197 = vmatprep.subr.mxu0 0.0
        %1198 = vmatpush1.msra.mxu0 0.0
        %1199 = vmatprep.subr.mxu0 0.0
        %1200 = vmatpush1.msra.mxu0 0.0
        %1201 = vmatprep.subr.mxu0 0.0
        %1202 = vmatpush1.msra.mxu0 0.0
        %1203 = vmatprep.subr.mxu0 0.0
        %1204 = vmatpush1.msra.mxu0 0.0
        %1205 = vmatprep.mubr.f32.mxu0 0.0
        %1206 = vmatmul.mubr.f32.gmra.mrb[0].mxu0 %v1064
        %v1207 = vpop.f32.mrb[0].mxu0
        %v1208 = vadd.f32 0.0, %v1207
        %v1209 = vpop.f32.mrb[0].mxu0
        %v1210 = vadd.f32 0.0, %v1209
        %1211 = vdwg.mxu0
        %1212 = vmatprep.subr.mxu0 0.0
        %1213 = vmatpush1.msra.mxu0 %v584
        %1214 = vmatprep.subr.mxu0 0.0
        %1215 = vmatpush1.msra.mxu0 %v587
        %1216 = vmatprep.subr.mxu0 0.0
        %1217 = vmatpush1.msra.mxu0 %v590
        %1218 = vmatprep.subr.mxu0 0.0
        %1219 = vmatpush1.msra.mxu0 %v593
        %1220 = vmatprep.subr.mxu0 0.0
        %1221 = vmatpush1.msra.mxu0 %v596
        %1222 = vmatprep.subr.mxu0 0.0
        %1223 = vmatpush1.msra.mxu0 %v599
        %1224 = vmatprep.subr.mxu0 0.0
        %1225 = vmatpush1.msra.mxu0 %v602
        %1226 = vmatprep.subr.mxu0 0.0
        %1227 = vmatpush1.msra.mxu0 %v605
        %1228 = vmatprep.subr.mxu0 0.0
        %1229 = vmatpush1.msra.mxu0 %v608
        %1230 = vmatprep.subr.mxu0 0.0
        %1231 = vmatpush1.msra.mxu0 %v611
        %1232 = vmatprep.subr.mxu0 0.0
        %1233 = vmatpush1.msra.mxu0 %v614
        %1234 = vmatprep.subr.mxu0 0.0
        %1235 = vmatpush1.msra.mxu0 %v617
        %1236 = vmatprep.subr.mxu0 0.0
        %1237 = vmatpush1.msra.mxu0 %v620
        %1238 = vmatprep.subr.mxu0 0.0
        %1239 = vmatpush1.msra.mxu0 %v623
        %1240 = vmatprep.subr.mxu0 0.0
        %1241 = vmatpush1.msra.mxu0 %v626
        %1242 = vmatprep.subr.mxu0 0.0
        %1243 = vmatpush1.msra.mxu0 %v629
        %1244 = vmatprep.subr.mxu0 0.0
        %1245 = vmatpush1.msra.mxu0 0.0
        %1246 = vmatprep.subr.mxu0 0.0
        %1247 = vmatpush1.msra.mxu0 0.0
        %1248 = vmatprep.subr.mxu0 0.0
        %1249 = vmatpush1.msra.mxu0 0.0
        %1250 = vmatprep.subr.mxu0 0.0
        %1251 = vmatpush1.msra.mxu0 0.0
        %1252 = vmatprep.subr.mxu0 0.0
        %1253 = vmatpush1.msra.mxu0 0.0
        %1254 = vmatprep.subr.mxu0 0.0
        %1255 = vmatpush1.msra.mxu0 0.0
        %1256 = vmatprep.subr.mxu0 0.0
        %1257 = vmatpush1.msra.mxu0 0.0
        %1258 = vmatprep.subr.mxu0 0.0
        %1259 = vmatpush1.msra.mxu0 0.0
        %1260 = vmatprep.subr.mxu0 0.0
        %1261 = vmatpush1.msra.mxu0 0.0
        %1262 = vmatprep.subr.mxu0 0.0
        %1263 = vmatpush1.msra.mxu0 0.0
        %1264 = vmatprep.subr.mxu0 0.0
        %1265 = vmatpush1.msra.mxu0 0.0
        %1266 = vmatprep.subr.mxu0 0.0
        %1267 = vmatpush1.msra.mxu0 0.0
        %1268 = vmatprep.subr.mxu0 0.0
        %1269 = vmatpush1.msra.mxu0 0.0
        %1270 = vmatprep.subr.mxu0 0.0
        %1271 = vmatpush1.msra.mxu0 0.0
        %1272 = vmatprep.subr.mxu0 0.0
        %1273 = vmatpush1.msra.mxu0 0.0
        %1274 = vmatprep.subr.mxu0 0.0
        %1275 = vmatpush1.msra.mxu0 0.0
        %1276 = vmatprep.mubr.f32.mxu0 0.0
        %1277 = vmatmul.mubr.f32.gmra.mrb[0].mxu0 %v1064
        %v1278 = vpop.f32.mrb[0].mxu0
        %v1279 = vadd.f32 0.0, %v1278
        %v1280 = vpop.f32.mrb[0].mxu0
        %1281 = vdwg.mxu0
        %v1282 = vadd.f32 %v1138, %v1208
        %v1283 = vxor.u32 %v1282, 2147483648
        %v1284 = vmul.f32 %v1283, 1.442695
        %v1285 = vpow.pop %v1284
        %v1286 = vadd.f32 %v1285, 1.0
        %v1287 = vrcp.pop %v1286
        %v1288 = vmul.f32 1.0, %v1287
        %v1289 = vadd.f32 %v1139, %v1210
        %v1290 = vxor.u32 %v1289, 2147483648
        %v1291 = vmul.f32 %v1290, 1.442695
        %v1292 = vpow.pop %v1291
        %v1293 = vadd.f32 %v1292, 1.0
        %v1294 = vrcp.pop %v1293
        %v1295 = vmul.f32 1.0, %v1294
        %v1296 = vadd.f32 %v1279, %v811
        %v1297 = vmul.f32 %v1288, %v1296
        %v1298 = vadd.f32 %v1140, %v1297
        %v1299 = vtanh.pop %v1298
        %v1300 = vsub.f32 1.0, %v1295
        %v1301 = vmul.f32 %v1300, %v1299
        %v1302 = vmul.f32 %v1295, %v1064
        %v1303 = vadd.f32 %v1301, %v1302
        %1304 = vmatprep.subr.mxu0 0.0
        %1305 = vmatpush1.msra.mxu0 %v630
        %1306 = vmatprep.subr.mxu0 0.0
        %1307 = vmatpush1.msra.mxu0 %v631
        %1308 = vmatprep.subr.mxu0 0.0
        %1309 = vmatpush1.msra.mxu0 %v632
        %1310 = vmatprep.subr.mxu0 0.0
        %1311 = vmatpush1.msra.mxu0 %v633
        %1312 = vmatprep.subr.mxu0 0.0
        %1313 = vmatpush1.msra.mxu0 %v634
        %1314 = vmatprep.subr.mxu0 0.0
        %1315 = vmatpush1.msra.mxu0 %v635
        %1316 = vmatprep.subr.mxu0 0.0
        %1317 = vmatpush1.msra.mxu0 %v636
        %1318 = vmatprep.subr.mxu0 0.0
        %1319 = vmatpush1.msra.mxu0 %v637
        %1320 = vmatprep.subr.mxu0 0.0
        %1321 = vmatpush1.msra.mxu0 %v638
        %1322 = vmatprep.subr.mxu0 0.0
        %1323 = vmatpush1.msra.mxu0 %v639
        %1324 = vmatprep.subr.mxu0 0.0
        %1325 = vmatpush1.msra.mxu0 %v640
        %1326 = vmatprep.subr.mxu0 0.0
        %1327 = vmatpush1.msra.mxu0 %v641
        %1328 = vmatprep.subr.mxu0 0.0
        %1329 = vmatpush1.msra.mxu0 %v642
        %1330 = vmatprep.subr.mxu0 0.0
        %1331 = vmatpush1.msra.mxu0 %v643
        %1332 = vmatprep.subr.mxu0 0.0
        %1333 = vmatpush1.msra.mxu0 %v644
        %1334 = vmatprep.subr.mxu0 0.0
        %1335 = vmatpush1.msra.mxu0 %v645
        %1336 = vmatprep.subr.mxu0 0.0
        %1337 = vmatpush1.msra.mxu0 0.0
        %1338 = vmatprep.subr.mxu0 0.0
        %1339 = vmatpush1.msra.mxu0 0.0
        %1340 = vmatprep.subr.mxu0 0.0
        %1341 = vmatpush1.msra.mxu0 0.0
        %1342 = vmatprep.subr.mxu0 0.0
        %1343 = vmatpush1.msra.mxu0 0.0
        %1344 = vmatprep.subr.mxu0 0.0
        %1345 = vmatpush1.msra.mxu0 0.0
        %1346 = vmatprep.subr.mxu0 0.0
        %1347 = vmatpush1.msra.mxu0 0.0
        %1348 = vmatprep.subr.mxu0 0.0
        %1349 = vmatpush1.msra.mxu0 0.0
        %1350 = vmatprep.subr.mxu0 0.0
        %1351 = vmatpush1.msra.mxu0 0.0
        %1352 = vmatprep.subr.mxu0 0.0
        %1353 = vmatpush1.msra.mxu0 0.0
        %1354 = vmatprep.subr.mxu0 0.0
        %1355 = vmatpush1.msra.mxu0 0.0
        %1356 = vmatprep.subr.mxu0 0.0
        %1357 = vmatpush1.msra.mxu0 0.0
        %1358 = vmatprep.subr.mxu0 0.0
        %1359 = vmatpush1.msra.mxu0 0.0
        %1360 = vmatprep.subr.mxu0 0.0
        %1361 = vmatpush1.msra.mxu0 0.0
        %1362 = vmatprep.subr.mxu0 0.0
        %1363 = vmatpush1.msra.mxu0 0.0
        %1364 = vmatprep.subr.mxu0 0.0
        %1365 = vmatpush1.msra.mxu0 0.0
        %1366 = vmatprep.subr.mxu0 0.0
        %1367 = vmatpush1.msra.mxu0 0.0
        %1368 = vmatprep.mubr.f32.mxu0 0.0
        %1369 = vmatmul.mubr.f32.gmra.mrb[0].mxu0 %v1303
        %v1370 = vpop.f32.mrb[0].mxu0
        %v1371 = vadd.f32 %v825, %v1370
        %v1372 = vpop.f32.mrb[0].mxu0
        %1373 = vdwg.mxu0
        %s1374 = scalar_lea.vmem %s245, 16 [#allocation8]
        %1375 = vst [vmem:[%s1374] sm:$0xff] %v1371
        %s1376 = scalar_lea.vmem [#allocation6], 72
        %v1377 = vld [vmem:[%s1376] sm:$0xff]
        %v1378 = vld [vmem:[%s1376 + $0x8] sm:$0xff]
        %v1379 = vld [vmem:[%s1376 + $0x10] sm:$0xff]
        %1380 = vmatprep.subr.mxu0 %v583
        %1381 = vmatpush1.msra.mxu0 %v582
        %1382 = vmatprep.subr.mxu0 %v586
        %1383 = vmatpush1.msra.mxu0 %v585
        %1384 = vmatprep.subr.mxu0 %v589
        %1385 = vmatpush1.msra.mxu0 %v588
        %1386 = vmatprep.subr.mxu0 %v592
        %1387 = vmatpush1.msra.mxu0 %v591
        %1388 = vmatprep.subr.mxu0 %v595
        %1389 = vmatpush1.msra.mxu0 %v594
        %1390 = vmatprep.subr.mxu0 %v598
        %1391 = vmatpush1.msra.mxu0 %v597
        %1392 = vmatprep.subr.mxu0 %v601
        %1393 = vmatpush1.msra.mxu0 %v600
        %1394 = vmatprep.subr.mxu0 %v604
        %1395 = vmatpush1.msra.mxu0 %v603
        %1396 = vmatprep.subr.mxu0 %v607
        %1397 = vmatpush1.msra.mxu0 %v606
        %1398 = vmatprep.subr.mxu0 %v610
        %1399 = vmatpush1.msra.mxu0 %v609
        %1400 = vmatprep.subr.mxu0 %v613
        %1401 = vmatpush1.msra.mxu0 %v612
        %1402 = vmatprep.subr.mxu0 %v616
        %1403 = vmatpush1.msra.mxu0 %v615
        %1404 = vmatprep.subr.mxu0 %v619
        %1405 = vmatpush1.msra.mxu0 %v618
        %1406 = vmatprep.subr.mxu0 %v622
        %1407 = vmatpush1.msra.mxu0 %v621
        %1408 = vmatprep.subr.mxu0 %v625
        %1409 = vmatpush1.msra.mxu0 %v624
        %1410 = vmatprep.subr.mxu0 %v628
        %1411 = vmatpush1.msra.mxu0 %v627
        %1412 = vmatprep.subr.mxu0 0.0
        %1413 = vmatpush1.msra.mxu0 0.0
        %1414 = vmatprep.subr.mxu0 0.0
        %1415 = vmatpush1.msra.mxu0 0.0
        %1416 = vmatprep.subr.mxu0 0.0
        %1417 = vmatpush1.msra.mxu0 0.0
        %1418 = vmatprep.subr.mxu0 0.0
        %1419 = vmatpush1.msra.mxu0 0.0
        %1420 = vmatprep.subr.mxu0 0.0
        %1421 = vmatpush1.msra.mxu0 0.0
        %1422 = vmatprep.subr.mxu0 0.0
        %1423 = vmatpush1.msra.mxu0 0.0
        %1424 = vmatprep.subr.mxu0 0.0
        %1425 = vmatpush1.msra.mxu0 0.0
        %1426 = vmatprep.subr.mxu0 0.0
        %1427 = vmatpush1.msra.mxu0 0.0
        %1428 = vmatprep.subr.mxu0 0.0
        %1429 = vmatpush1.msra.mxu0 0.0
        %1430 = vmatprep.subr.mxu0 0.0
        %1431 = vmatpush1.msra.mxu0 0.0
        %1432 = vmatprep.subr.mxu0 0.0
        %1433 = vmatpush1.msra.mxu0 0.0
        %1434 = vmatprep.subr.mxu0 0.0
        %1435 = vmatpush1.msra.mxu0 0.0
        %1436 = vmatprep.subr.mxu0 0.0
        %1437 = vmatpush1.msra.mxu0 0.0
        %1438 = vmatprep.subr.mxu0 0.0
        %1439 = vmatpush1.msra.mxu0 0.0
        %1440 = vmatprep.subr.mxu0 0.0
        %1441 = vmatpush1.msra.mxu0 0.0
        %1442 = vmatprep.subr.mxu0 0.0
        %1443 = vmatpush1.msra.mxu0 0.0
        %1444 = vmatprep.mubr.f32.mxu0 0.0
        %1445 = vmatmul.mubr.f32.gmra.mrb[0].mxu0 %v1303
        %v1446 = vpop.f32.mrb[0].mxu0
        %v1447 = vadd.f32 0.0, %v1446
        %v1448 = vpop.f32.mrb[0].mxu0
        %v1449 = vadd.f32 0.0, %v1448
        %1450 = vdwg.mxu0
        %1451 = vmatprep.subr.mxu0 0.0
        %1452 = vmatpush1.msra.mxu0 %v584
        %1453 = vmatprep.subr.mxu0 0.0
        %1454 = vmatpush1.msra.mxu0 %v587
        %1455 = vmatprep.subr.mxu0 0.0
        %1456 = vmatpush1.msra.mxu0 %v590
        %1457 = vmatprep.subr.mxu0 0.0
        %1458 = vmatpush1.msra.mxu0 %v593
        %1459 = vmatprep.subr.mxu0 0.0
        %1460 = vmatpush1.msra.mxu0 %v596
        %1461 = vmatprep.subr.mxu0 0.0
        %1462 = vmatpush1.msra.mxu0 %v599
        %1463 = vmatprep.subr.mxu0 0.0
        %1464 = vmatpush1.msra.mxu0 %v602
        %1465 = vmatprep.subr.mxu0 0.0
        %1466 = vmatpush1.msra.mxu0 %v605
        %1467 = vmatprep.subr.mxu0 0.0
        %1468 = vmatpush1.msra.mxu0 %v608
        %1469 = vmatprep.subr.mxu0 0.0
        %1470 = vmatpush1.msra.mxu0 %v611
        %1471 = vmatprep.subr.mxu0 0.0
        %1472 = vmatpush1.msra.mxu0 %v614
        %1473 = vmatprep.subr.mxu0 0.0
        %1474 = vmatpush1.msra.mxu0 %v617
        %1475 = vmatprep.subr.mxu0 0.0
        %1476 = vmatpush1.msra.mxu0 %v620
        %1477 = vmatprep.subr.mxu0 0.0
        %1478 = vmatpush1.msra.mxu0 %v623
        %1479 = vmatprep.subr.mxu0 0.0
        %1480 = vmatpush1.msra.mxu0 %v626
        %1481 = vmatprep.subr.mxu0 0.0
        %1482 = vmatpush1.msra.mxu0 %v629
        %1483 = vmatprep.subr.mxu0 0.0
        %1484 = vmatpush1.msra.mxu0 0.0
        %1485 = vmatprep.subr.mxu0 0.0
        %1486 = vmatpush1.msra.mxu0 0.0
        %1487 = vmatprep.subr.mxu0 0.0
        %1488 = vmatpush1.msra.mxu0 0.0
        %1489 = vmatprep.subr.mxu0 0.0
        %1490 = vmatpush1.msra.mxu0 0.0
        %1491 = vmatprep.subr.mxu0 0.0
        %1492 = vmatpush1.msra.mxu0 0.0
        %1493 = vmatprep.subr.mxu0 0.0
        %1494 = vmatpush1.msra.mxu0 0.0
        %1495 = vmatprep.subr.mxu0 0.0
        %1496 = vmatpush1.msra.mxu0 0.0
        %1497 = vmatprep.subr.mxu0 0.0
        %1498 = vmatpush1.msra.mxu0 0.0
        %1499 = vmatprep.subr.mxu0 0.0
        %1500 = vmatpush1.msra.mxu0 0.0
        %1501 = vmatprep.subr.mxu0 0.0
        %1502 = vmatpush1.msra.mxu0 0.0
        %1503 = vmatprep.subr.mxu0 0.0
        %1504 = vmatpush1.msra.mxu0 0.0
        %1505 = vmatprep.subr.mxu0 0.0
        %1506 = vmatpush1.msra.mxu0 0.0
        %1507 = vmatprep.subr.mxu0 0.0
        %1508 = vmatpush1.msra.mxu0 0.0
        %1509 = vmatprep.subr.mxu0 0.0
        %1510 = vmatpush1.msra.mxu0 0.0
        %1511 = vmatprep.subr.mxu0 0.0
        %1512 = vmatpush1.msra.mxu0 0.0
        %1513 = vmatprep.subr.mxu0 0.0
        %1514 = vmatpush1.msra.mxu0 0.0
        %1515 = vmatprep.mubr.f32.mxu0 0.0
        %1516 = vmatmul.mubr.f32.gmra.mrb[0].mxu0 %v1303
        %v1517 = vpop.f32.mrb[0].mxu0
        %v1518 = vadd.f32 0.0, %v1517
        %v1519 = vpop.f32.mrb[0].mxu0
        %1520 = vdwg.mxu0
        %v1521 = vadd.f32 %v1377, %v1447
        %v1522 = vxor.u32 %v1521, 2147483648
        %v1523 = vmul.f32 %v1522, 1.442695
        %v1524 = vpow.pop %v1523
        %v1525 = vadd.f32 %v1524, 1.0
        %v1526 = vrcp.pop %v1525
        %v1527 = vmul.f32 1.0, %v1526
        %v1528 = vadd.f32 %v1378, %v1449
        %v1529 = vxor.u32 %v1528, 2147483648
        %v1530 = vmul.f32 %v1529, 1.442695
        %v1531 = vpow.pop %v1530
        %v1532 = vadd.f32 %v1531, 1.0
        %v1533 = vrcp.pop %v1532
        %v1534 = vmul.f32 1.0, %v1533
        %v1535 = vadd.f32 %v1518, %v811
        %v1536 = vmul.f32 %v1527, %v1535
        %v1537 = vadd.f32 %v1379, %v1536
        %v1538 = vtanh.pop %v1537
        %v1539 = vsub.f32 1.0, %v1534
        %v1540 = vmul.f32 %v1539, %v1538
        %v1541 = vmul.f32 %v1534, %v1303
        %v1542 = vadd.f32 %v1540, %v1541
        %1543 = vmatprep.subr.mxu0 0.0
        %1544 = vmatpush1.msra.mxu0 %v630
        %1545 = vmatprep.subr.mxu0 0.0
        %1546 = vmatpush1.msra.mxu0 %v631
        %1547 = vmatprep.subr.mxu0 0.0
        %1548 = vmatpush1.msra.mxu0 %v632
        %1549 = vmatprep.subr.mxu0 0.0
        %1550 = vmatpush1.msra.mxu0 %v633
        %1551 = vmatprep.subr.mxu0 0.0
        %1552 = vmatpush1.msra.mxu0 %v634
        %1553 = vmatprep.subr.mxu0 0.0
        %1554 = vmatpush1.msra.mxu0 %v635
        %1555 = vmatprep.subr.mxu0 0.0
        %1556 = vmatpush1.msra.mxu0 %v636
        %1557 = vmatprep.subr.mxu0 0.0
        %1558 = vmatpush1.msra.mxu0 %v637
        %1559 = vmatprep.subr.mxu0 0.0
        %1560 = vmatpush1.msra.mxu0 %v638
        %1561 = vmatprep.subr.mxu0 0.0
        %1562 = vmatpush1.msra.mxu0 %v639
        %1563 = vmatprep.subr.mxu0 0.0
        %1564 = vmatpush1.msra.mxu0 %v640
        %1565 = vmatprep.subr.mxu0 0.0
        %1566 = vmatpush1.msra.mxu0 %v641
        %1567 = vmatprep.subr.mxu0 0.0
        %1568 = vmatpush1.msra.mxu0 %v642
        %1569 = vmatprep.subr.mxu0 0.0
        %1570 = vmatpush1.msra.mxu0 %v643
        %1571 = vmatprep.subr.mxu0 0.0
        %1572 = vmatpush1.msra.mxu0 %v644
        %1573 = vmatprep.subr.mxu0 0.0
        %1574 = vmatpush1.msra.mxu0 %v645
        %1575 = vmatprep.subr.mxu0 0.0
        %1576 = vmatpush1.msra.mxu0 0.0
        %1577 = vmatprep.subr.mxu0 0.0
        %1578 = vmatpush1.msra.mxu0 0.0
        %1579 = vmatprep.subr.mxu0 0.0
        %1580 = vmatpush1.msra.mxu0 0.0
        %1581 = vmatprep.subr.mxu0 0.0
        %1582 = vmatpush1.msra.mxu0 0.0
        %1583 = vmatprep.subr.mxu0 0.0
        %1584 = vmatpush1.msra.mxu0 0.0
        %1585 = vmatprep.subr.mxu0 0.0
        %1586 = vmatpush1.msra.mxu0 0.0
        %1587 = vmatprep.subr.mxu0 0.0
        %1588 = vmatpush1.msra.mxu0 0.0
        %1589 = vmatprep.subr.mxu0 0.0
        %1590 = vmatpush1.msra.mxu0 0.0
        %1591 = vmatprep.subr.mxu0 0.0
        %1592 = vmatpush1.msra.mxu0 0.0
        %1593 = vmatprep.subr.mxu0 0.0
        %1594 = vmatpush1.msra.mxu0 0.0
        %1595 = vmatprep.subr.mxu0 0.0
        %1596 = vmatpush1.msra.mxu0 0.0
        %1597 = vmatprep.subr.mxu0 0.0
        %1598 = vmatpush1.msra.mxu0 0.0
        %1599 = vmatprep.subr.mxu0 0.0
        %1600 = vmatpush1.msra.mxu0 0.0
        %1601 = vmatprep.subr.mxu0 0.0
        %1602 = vmatpush1.msra.mxu0 0.0
        %1603 = vmatprep.subr.mxu0 0.0
        %1604 = vmatpush1.msra.mxu0 0.0
        %1605 = vmatprep.subr.mxu0 0.0
        %1606 = vmatpush1.msra.mxu0 0.0
        %1607 = vmatprep.mubr.f32.mxu0 0.0
        %1608 = vmatmul.mubr.f32.gmra.mrb[0].mxu0 %v1542
        %v1609 = vpop.f32.mrb[0].mxu0
        %v1610 = vadd.f32 %v825, %v1609
        %v1611 = vpop.f32.mrb[0].mxu0
        %1612 = vdwg.mxu0
        %s1613 = scalar_lea.vmem %s245, 24 [#allocation8]
        %1614 = vst [vmem:[%s1613] sm:$0xff] %v1610
        %1615 = vst [vmem:[#allocation7] sm:$0xff] %v1542
        %1616 = vst [vmem:[#allocation10] sm:$0xff] %v1542
        %s1617 = sand.u32 %s143, 1
        %s1618 = scalar_lea.sflag [#allocation9], %s1617
        %s1619 = sand.u32 %s143, 1
        %s1620 = smul.addr %s1619, 32
        %s1621 = scalar_lea.vmem [#allocation8], %s1620
        // Predicated region
        $region90: #{tpu_custom_call.1} parent=39 // pred_check
          %p1622 = pneg %p153
        $region91: #{tpu_custom_call.1} parent=39 // pred_check_branch
          %1624 = sbr.rel (%p1622) target = $region93
        $region92: #{tpu_custom_call.1} parent=39 // pred_region
          %s1625 = smul.u32 4, %s25
          %s1627 = ssub.s32 512, 512
          %1628 = vsyncadd %s1618, %s1627
          %s1629 = smul.addr %s1625, 128
          %s1630 = scalar_lea.hbm %s8, %s1629
          %s1631 = sshll.u32 %s1621, 4
          %s1632 = int_to_ptr.vmem [resolvable:$true] %s1631
          %1637 = dma.vmem_to_hbm [thread:$0]  %s1632, 512, %s1630, %s1618, 128, 128, 8
        $region93: #{tpu_custom_call.1} parent=39 // pred_fallthru
          _
        // Predicated region
        $region94: #{tpu_custom_call.1} parent=39 // pred_check
          %p1638 = pneg %p174
        $region95: #{tpu_custom_call.1} parent=39 // pred_check_branch
          %1640 = sbr.rel (%p1638) target = $region97
        $region96: #{tpu_custom_call.1} parent=39 // pred_region
          %s1642 = ssub.s32 128, 128
          %1643 = vsyncadd [#allocation11], %s1642
          %s1645 = sshll.u32 [#allocation10], 4
          %s1646 = int_to_ptr.vmem [resolvable:$true] %s1645
          %1648 = dma.vmem_to_hbm [thread:$0]  %s1646, 128, %s9, [#allocation11]
        $region97: #{tpu_custom_call.1} parent=39 // pred_fallthru
          _
        // Predicated region
        $region98: #{tpu_custom_call.1} parent=39 // pred_check
          %p1649 = pneg %p174
        $region99: #{tpu_custom_call.1} parent=39 // pred_check_branch
          %1651 = sbr.rel (%p1649) target = $region101
        $region100: #{tpu_custom_call.1} parent=39 // pred_region
          %1652 = dma.done [#allocation11], 128
        $region101: #{tpu_custom_call.1} parent=39 // pred_fallthru
          _
      $region40: #{tpu_custom_call.1} parent=5 // pred_fallthru
        _
      %p1653 = scmp.le.s32.totalorder 2, %s20
      // Predicated region
      $region102: #{tpu_custom_call.1} parent=5 // pred_check
        %p1654 = pneg %p1653
      $region103: #{tpu_custom_call.1} parent=5 // pred_check_branch
        %1656 = sbr.rel (%p1654) target = $region105
      $region104: #{tpu_custom_call.1} parent=5 // pred_region
        %s1657 = ssub.s32 %s20, 2
        // Predicated region
        $region106: #{tpu_custom_call.1} parent=104 // pred_check
          %p1658 = pneg %p159
        $region107: #{tpu_custom_call.1} parent=104 // pred_check_branch
          %1660 = sbr.rel (%p1658) target = $region109
        $region108: #{tpu_custom_call.1} parent=104 // pred_region
          %s1661 = sand.u32 %s144, 1
          %s1662 = scalar_lea.sflag [#allocation9], %s1661
          %s1663 = sand.u32 %s144, 1
          %s1664 = smul.addr %s1663, 32
          %s1665 = scalar_lea.vmem [#allocation8], %s1664
          %1666 = dma.done %s1662, 512
        $region109: #{tpu_custom_call.1} parent=104 // pred_fallthru
          _
      $region105: #{tpu_custom_call.1} parent=5 // pred_fallthru
        _
    $region6: #{tpu_custom_call.1} parent=1 // loop_footer
      %s24 = sadd.s32 1, %s20
    $region7: #{tpu_custom_call.1} parent=1 // loop_footer_branch
      %19 = sbr.rel target = $region3
    $region8: #{tpu_custom_call.1} parent=1 // loop_exit
      _
    %1667 = vsyncpa [#allocation9], 1
    %s1668 = scalar_lea.sflag [#allocation9], 1
    %1669 = vsyncpa %s1668, 1
    %1670 = vsyncpa [#allocation11], 1
  %1671 = vsyncmov [#allocation5]
  %s1672 = vpop.sfrf %1671
  %p1673 = scmp.eq.s32.totalorder %s1672, 0
  %p1674 = pneg %p1673
  %1676 = shalt.err (%p1674)
  %s1677 = scalar_lea.sflag [#allocation5], 1
  %1678 = vsyncmov %s1677
  %s1679 = vpop.sfrf %1678
  %p1680 = scmp.eq.s32.totalorder %s1679, 0
  %p1681 = pneg %p1680
  %1683 = shalt.err (%p1681)
  %s1684 = scalar_lea.sflag [#allocation5], 2
  %1685 = vsyncmov %s1684
  %s1686 = vpop.sfrf %1685
  %p1687 = scmp.eq.s32.totalorder %s1686, 0
  %p1688 = pneg %p1687
  %1690 = shalt.err (%p1688)

</llo_original>
